<compile_context>
chip_gen: v5e
topology: v5e:2x2
jax: 0.10.0
libtpu: 0.0.40
codegen_flags: <defaults>
</compile_context>

<pallas_src>
import jax
import jax.numpy as jnp
import numpy as np
from jax.experimental import pallas as pl
from jax.experimental.pallas import tpu as pltpu


def _softplus(x):
    # numerically stable softplus, matches torch.nn.functional.softplus(beta=1)
    return jnp.maximum(x, 0.0) + jnp.log1p(jnp.exp(-jnp.abs(x)))


def _round_up(v, m):
    return ((v + m - 1) // m) * m


def _choose_batch_tiling(batch, max_tile=512):
    """Pick (tile_b, padded_batch).

    tile_b is a multiple of 8 (sublane granularity), capped at max_tile, and
    for batches > 16 chosen so the grid has >= 2 steps (lets the "parallel"
    batch axis shard across v7x's two TensorCores).
    """
    padded = _round_up(batch, 8)
    if padded <= 16:
        return padded, padded                      # one tiny tile
    tile = min(max_tile, _round_up(pl.cdiv(padded, 2), 8))
    padded = _round_up(padded, tile)
    return tile, padded


def _make_aux_mlp_kernel(num_hidden_layers, pad_dout):
    """Kernel for a fixed number of hidden layers.

    Ref order: x, (w_i, b_i) per hidden layer, w_final, b_final, mean, var.
    Weights are bf16; activations/bias/softplus in f32.  The final layer
    produces 2*pad_dout columns ([mean_pad | var_pad], pad_dout % 128 == 0),
    so both the mean copy and the var softplus operate on lane-aligned halves
    and both stores are unmasked lane-dense stores.
    """

    def kernel(*refs):
        x_ref = refs[0]
        mean_ref, var_ref = refs[-2], refs[-1]

        h = x_ref[...]                                      # (tile_b, Din) f32
        idx = 1
        for _ in range(num_hidden_layers):
            w_ref, b_ref = refs[idx], refs[idx + 1]
            idx += 2
            h = jnp.dot(h.astype(jnp.bfloat16), w_ref[...],   # bf16 x bf16 MXU
                        preferred_element_type=jnp.float32)
            h = jnp.maximum(h + b_ref[...], 0.0)               # bias + ReLU, f32

        wf_ref, bf_ref = refs[idx], refs[idx + 1]
        f = jnp.dot(h.astype(jnp.bfloat16), wf_ref[...],
                    preferred_element_type=jnp.float32)
        f = f + bf_ref[...]                                  # (tile_b, 2*pad_dout)

        # chunk(2, dim=-1): both halves are lane-aligned (pad_dout % 128 == 0),
        # so slicing costs nothing and softplus runs only on the var half.
        mean_ref[...] = f[:, :pad_dout]
        var_ref[...] = _softplus(f[:, pad_dout:]) + 1e-6

    return kernel


def aux_mlp_forward(x, params, *, max_batch_tile=512):
    """AUX_MLP.forward.

    x:      (B, Din) f32
    params: {"hidden": [(W, b), ...], "final": (Wf, bf)} with W stored
            (in_features, out_features) (pre-transposed vs torch.nn.Linear)
            and b stored (1, out_features).  Wf has 2*output_dim columns.
    Returns (mean, var), each (B, output_dim) f32.
    """
    hidden = params["hidden"]
    wf, bf = params["final"]

    batch, din = x.shape
    h_last, two_dout = wf.shape
    dout = two_dout // 2
    pad_dout = _round_up(dout, 128)           # lane-dense per-head width

    # ---- parameter prep: bf16 weights (halves HBM/DMA), f32 biases ----------
    ws = [w.astype(jnp.bfloat16) for w, _ in hidden]
    bs = [b.astype(jnp.float32) for _, b in hidden]

    wf32 = wf.astype(jnp.float32)
    bf32 = bf.astype(jnp.float32)
    wm = jnp.pad(wf32[:, :dout], ((0, 0), (0, pad_dout - dout)))
    wv = jnp.pad(wf32[:, dout:], ((0, 0), (0, pad_dout - dout)))
    wf_p = jnp.concatenate([wm, wv], axis=1).astype(jnp.bfloat16)   # (H, 2*pad_dout)
    bm = jnp.pad(bf32[:, :dout], ((0, 0), (0, pad_dout - dout)))
    bv = jnp.pad(bf32[:, dout:], ((0, 0), (0, pad_dout - dout)))
    bf_p = jnp.concatenate([bm, bv], axis=1)                        # (1, 2*pad_dout) f32

    flat_params = []
    for w, b in zip(ws, bs):
        flat_params += [w, b]
    flat_params += [wf_p, bf_p]

    # ---- batch tiling (cdiv grid + wrapper-side zero padding) ---------------
    tile_b, padded_batch = _choose_batch_tiling(batch, max_batch_tile)
    x_in = x.astype(jnp.float32)
    if padded_batch != batch:
        x_in = jnp.pad(x_in, ((0, padded_batch - batch), (0, 0)))
    grid = (padded_batch // tile_b,)

    # ---- cost estimate & VMEM budget ----------------------------------------
    dims = [din] + [w.shape[1] for w, _ in hidden] + [2 * pad_dout]
    flops = 2 * padded_batch * sum(a * b for a, b in zip(dims[:-1], dims[1:]))
    transcendentals = padded_batch * pad_dout * 2          # exp + log1p (softplus)
    w_bytes = sum(int(p.size) * p.dtype.itemsize for p in flat_params)
    out_bytes = 2 * padded_batch * pad_dout * 4
    bytes_accessed = int(x_in.size) * 4 + w_bytes + out_bytes
    cost = pl.CostEstimate(flops=flops, transcendentals=transcendentals,
                           bytes_accessed=bytes_accessed)

    # weights (worst case double-buffered) + double-buffered x tile + 2 out tiles
    io_tile_bytes = 2 * (tile_b * din * 4) + 2 * 2 * (tile_b * pad_dout * 4)
    vmem_limit = int(min(max(2 * (2 * w_bytes + io_tile_bytes), 16 << 20), 64 << 20))

    kernel = _make_aux_mlp_kernel(len(hidden), pad_dout)
    out_shape = (jax.ShapeDtypeStruct((padded_batch, pad_dout), jnp.float32),
                 jax.ShapeDtypeStruct((padded_batch, pad_dout), jnp.float32))

    def _call(single_buffer_weights):
        # Grid-invariant weights/biases: single-buffer them so they don't eat
        # 2x VMEM (important on v7x's 64 MiB).
        weight_kw = ({"pipeline_mode": pl.Buffered(1)}
                     if single_buffer_weights else {})
        in_specs = [pl.BlockSpec((tile_b, din), lambda i: (i, 0))]   # x, batch-tiled
        for p in flat_params:
            in_specs.append(pl.BlockSpec(p.shape, lambda i: (0, 0), **weight_kw))
        out_specs = (pl.BlockSpec((tile_b, pad_dout), lambda i: (i, 0)),
                     pl.BlockSpec((tile_b, pad_dout), lambda i: (i, 0)))
        return pl.pallas_call(
            kernel,
            out_shape=out_shape,
            grid=grid,
            in_specs=in_specs,
            out_specs=out_specs,
            compiler_params=pltpu.CompilerParams(
                dimension_semantics=("parallel",),   # batch tiles are independent
                vmem_limit_bytes=vmem_limit,
            ),
            cost_estimate=cost,
        )(x_in, *flat_params)

    try:
        mean_p, var_p = _call(True)
    except Exception:
        # Fallback for Pallas builds that reject Buffered(1) on invariant inputs.
        mean_p, var_p = _call(False)

    # Strip batch and lane padding (torch .chunk(2, -1) split already done by
    # the two lane-dense output heads).
    mean = mean_p[:batch, :dout]
    var = var_p[:batch, :dout]
    return mean, var


def init_params(key, input_dim, hidden_layers, output_dim):
    """Deterministic synthetic parameters (torch.nn.Linear-style uniform init).

    Weights are stored already transposed relative to torch.nn.Linear, i.e.
    (in_features, out_features), so the kernel computes x @ W + b.
    """
    dims = [input_dim] + list(hidden_layers)
    n_keys = 2 * len(hidden_layers) + 2
    keys = jax.random.split(key, n_keys)

    def unif(k, shape, fan_in):
        bound = 1.0 / np.sqrt(fan_in)
        return jax.random.uniform(k, shape, jnp.float32, -bound, bound)

    hidden = []
    ki = 0
    for din, dh in zip(dims[:-1], dims[1:]):
        w = unif(keys[ki], (din, dh), din)
        b = unif(keys[ki + 1], (1, dh), din)
        ki += 2
        hidden.append((w, b))

    h_last = dims[-1]
    wf = unif(keys[ki], (h_last, 2 * output_dim), h_last)
    bf = unif(keys[ki + 1], (1, 2 * output_dim), h_last)

    return {"hidden": hidden, "final": (wf, bf)}


def reference_forward(x, params):
    """Pure-JAX reference mirroring AUX_MLP.forward (ReLU activation).

    Uses the same bf16 matmul-input / f32-accumulate precision as the kernel
    so the comparison isolates structural correctness from bf16 rounding.
    """
    h = x.astype(jnp.float32)
    for w, b in params["hidden"]:
        h = jnp.dot(h.astype(jnp.bfloat16), w.astype(jnp.bfloat16),
                    preferred_element_type=jnp.float32) + b[0]
        h = jnp.maximum(h, 0.0)
    wf, bf = params["final"]
    f = jnp.dot(h.astype(jnp.bfloat16), wf.astype(jnp.bfloat16),
                preferred_element_type=jnp.float32) + bf[0]
    dout = f.shape[-1] // 2
    mean = f[:, :dout]
    var = _softplus(f[:, dout:]) + 1e-6
    return mean, var


if __name__ == "__main__":
    # small synthetic instantiation of
    # AUX_MLP(input_dim=16, hidden_layers=[32, 32], output_dim=8, activation=ReLU)
    # batch=24 deliberately exercises the cdiv/padding path and a 2-step
    # "parallel" batch grid.
    batch = 24
    input_dim = 16
    hidden_layers = (32, 32)
    output_dim = 8

    key = jax.random.PRNGKey(0)
    k_x, k_p = jax.random.split(key)
    x = jax.random.normal(k_x, (batch, input_dim), jnp.float32)
    params = init_params(k_p, input_dim, hidden_layers, output_dim)

    mean, var = aux_mlp_forward(x, params)
    mean, var = jax.block_until_ready((mean, var))

    ref_mean, ref_var = reference_forward(x, params)
    np.testing.assert_allclose(np.asarray(mean), np.asarray(ref_mean),
                               rtol=1e-2, atol=1e-2, err_msg="mean")
    np.testing.assert_allclose(np.asarray(var), np.asarray(ref_var),
                               rtol=1e-2, atol=1e-2, err_msg="var")
    assert mean.shape == (batch, output_dim) and var.shape == (batch, output_dim)
    assert bool(jnp.all(var > 0.0))

    print("KERNEL_OK")
</pallas_src>

<mosaic_0001>
module attributes {stable_mosaic.version = 11 : i64} {
  func.func @kernel(%arg0: i32, %arg1: memref<16x16xf32, #tpu.memory_space<vmem>>, %arg2: memref<16x32xbf16, #tpu.memory_space<vmem>>, %arg3: memref<1x32xf32, #tpu.memory_space<vmem>>, %arg4: memref<32x32xbf16, #tpu.memory_space<vmem>>, %arg5: memref<1x32xf32, #tpu.memory_space<vmem>>, %arg6: memref<32x256xbf16, #tpu.memory_space<vmem>>, %arg7: memref<1x256xf32, #tpu.memory_space<vmem>>, %arg8: memref<16x128xf32, #tpu.memory_space<vmem>>, %arg9: memref<16x128xf32, #tpu.memory_space<vmem>>) attributes {dimension_semantics = [#tpu.dimension_semantics<parallel>], iteration_bounds = array<i64: 2>, scalar_prefetch = 0 : i64, scratch_operands = 0 : i64, tpu.core_type = #tpu.core_type<tc>, window_params = [{transform_indices = @transform_0, window_bounds = array<i64: 16, 16>}, {pipeline_mode = #tpu.pipeline_mode<synchronous>, transform_indices = @transform_1, window_bounds = array<i64: 16, 32>}, {pipeline_mode = #tpu.pipeline_mode<synchronous>, transform_indices = @transform_2, window_bounds = array<i64: 1, 32>}, {pipeline_mode = #tpu.pipeline_mode<synchronous>, transform_indices = @transform_3, window_bounds = array<i64: 32, 32>}, {pipeline_mode = #tpu.pipeline_mode<synchronous>, transform_indices = @transform_4, window_bounds = array<i64: 1, 32>}, {pipeline_mode = #tpu.pipeline_mode<synchronous>, transform_indices = @transform_5, window_bounds = array<i64: 32, 256>}, {pipeline_mode = #tpu.pipeline_mode<synchronous>, transform_indices = @transform_6, window_bounds = array<i64: 1, 256>}, {transform_indices = @transform_7, window_bounds = array<i64: 16, 128>}, {transform_indices = @transform_8, window_bounds = array<i64: 16, 128>}]} {
    %c0 = arith.constant 0 : index
    %c0_0 = arith.constant 0 : index
    %0 = vector.load %arg1[%c0, %c0_0] : memref<16x16xf32, #tpu.memory_space<vmem>>, vector<16x16xf32>
    %1 = arith.truncf %0 : vector<16x16xf32> to vector<16x16xbf16>
    %c0_1 = arith.constant 0 : index
    %c0_2 = arith.constant 0 : index
    %2 = vector.load %arg2[%c0_1, %c0_2] : memref<16x32xbf16, #tpu.memory_space<vmem>>, vector<16x32xbf16>
    %cst = arith.constant dense<0.000000e+00> : vector<16x32xf32>
    %3 = tpu.matmul %1, %2, %cst {dimension_numbers = #tpu.dot_dimension_numbers<[1], [0], [0], [1], [0, 0, 1, 1], [], []>} : vector<16x16xbf16>, vector<16x32xbf16>, vector<16x32xf32> -> vector<16x32xf32>
    %c0_3 = arith.constant 0 : index
    %c0_4 = arith.constant 0 : index
    %4 = vector.load %arg3[%c0_3, %c0_4] : memref<1x32xf32, #tpu.memory_space<vmem>>, vector<1x32xf32>
    %5 = vector.broadcast %4 : vector<1x32xf32> to vector<16x32xf32>
    %6 = arith.addf %3, %5 : vector<16x32xf32>
    %cst_5 = arith.constant 0.000000e+00 : f32
    %7 = vector.broadcast %cst_5 : f32 to vector<16x32xf32>
    %8 = arith.maximumf %6, %7 : vector<16x32xf32>
    %9 = arith.truncf %8 : vector<16x32xf32> to vector<16x32xbf16>
    %c0_6 = arith.constant 0 : index
    %c0_7 = arith.constant 0 : index
    %10 = vector.load %arg4[%c0_6, %c0_7] : memref<32x32xbf16, #tpu.memory_space<vmem>>, vector<32x32xbf16>
    %cst_8 = arith.constant dense<0.000000e+00> : vector<16x32xf32>
    %11 = tpu.matmul %9, %10, %cst_8 {dimension_numbers = #tpu.dot_dimension_numbers<[1], [0], [0], [1], [0, 0, 1, 1], [], []>} : vector<16x32xbf16>, vector<32x32xbf16>, vector<16x32xf32> -> vector<16x32xf32>
    %c0_9 = arith.constant 0 : index
    %c0_10 = arith.constant 0 : index
    %12 = vector.load %arg5[%c0_9, %c0_10] : memref<1x32xf32, #tpu.memory_space<vmem>>, vector<1x32xf32>
    %13 = vector.broadcast %12 : vector<1x32xf32> to vector<16x32xf32>
    %14 = arith.addf %11, %13 : vector<16x32xf32>
    %cst_11 = arith.constant 0.000000e+00 : f32
    %15 = vector.broadcast %cst_11 : f32 to vector<16x32xf32>
    %16 = arith.maximumf %14, %15 : vector<16x32xf32>
    %17 = arith.truncf %16 : vector<16x32xf32> to vector<16x32xbf16>
    %c0_12 = arith.constant 0 : index
    %c0_13 = arith.constant 0 : index
    %18 = vector.load %arg6[%c0_12, %c0_13] : memref<32x256xbf16, #tpu.memory_space<vmem>>, vector<32x256xbf16>
    %cst_14 = arith.constant dense<0.000000e+00> : vector<16x256xf32>
    %19 = tpu.matmul %17, %18, %cst_14 {dimension_numbers = #tpu.dot_dimension_numbers<[1], [0], [0], [1], [0, 0, 1, 1], [], []>} : vector<16x32xbf16>, vector<32x256xbf16>, vector<16x256xf32> -> vector<16x256xf32>
    %c0_15 = arith.constant 0 : index
    %c0_16 = arith.constant 0 : index
    %20 = vector.load %arg7[%c0_15, %c0_16] : memref<1x256xf32, #tpu.memory_space<vmem>>, vector<1x256xf32>
    %21 = vector.broadcast %20 : vector<1x256xf32> to vector<16x256xf32>
    %22 = arith.addf %19, %21 : vector<16x256xf32>
    %23 = vector.extract_strided_slice %22 {offsets = [0, 0], sizes = [16, 128], strides = [1, 1]} : vector<16x256xf32> to vector<16x128xf32>
    %c0_17 = arith.constant 0 : index
    %c0_18 = arith.constant 0 : index
    %24 = vector.load %arg8[%c0_17, %c0_18] : memref<16x128xf32, #tpu.memory_space<vmem>>, vector<16x128xf32>
    tpu.vector_store %arg8[%c0_17, %c0_18], %23 {strides = array<i32>} : memref<16x128xf32, #tpu.memory_space<vmem>>, vector<16x128xf32>,
    %25 = vector.extract_strided_slice %22 {offsets = [0, 128], sizes = [16, 128], strides = [1, 1]} : vector<16x256xf32> to vector<16x128xf32>
    %cst_19 = arith.constant 0.000000e+00 : f32
    %26 = vector.broadcast %cst_19 : f32 to vector<16x128xf32>
    %27 = arith.maximumf %25, %26 : vector<16x128xf32>
    %28 = math.absf %25 : vector<16x128xf32>
    %cst_20 = arith.constant 0.000000e+00 : f32
    %29 = vector.broadcast %cst_20 : f32 to vector<16x128xf32>
    %30 = arith.subf %29, %28 : vector<16x128xf32>
    %31 = math.exp %30 : vector<16x128xf32>
    %32 = math.log1p %31 : vector<16x128xf32>
    %33 = arith.addf %27, %32 : vector<16x128xf32>
    %cst_21 = arith.constant 9.99999997E-7 : f32
    %34 = vector.broadcast %cst_21 : f32 to vector<16x128xf32>
    %35 = arith.addf %33, %34 : vector<16x128xf32>
    %c0_22 = arith.constant 0 : index
    %c0_23 = arith.constant 0 : index
    %36 = vector.load %arg9[%c0_22, %c0_23] : memref<16x128xf32, #tpu.memory_space<vmem>>, vector<16x128xf32>
    tpu.vector_store %arg9[%c0_22, %c0_23], %35 {strides = array<i32>} : memref<16x128xf32, #tpu.memory_space<vmem>>, vector<16x128xf32>,
    return
  }
  func.func @transform_0(%arg0: i32) -> (i32, i32) {
    %c0_i32 = arith.constant 0 : i32
    %c0_i32_0 = arith.constant 0 : i32
    return %arg0, %c0_i32 : i32, i32
  }
  func.func @transform_1(%arg0: i32) -> (i32, i32) {
    %c0_i32 = arith.constant 0 : i32
    %c0_i32_0 = arith.constant 0 : i32
    %c0_i32_1 = arith.constant 0 : i32
    return %c0_i32, %c0_i32_0 : i32, i32
  }
  func.func @transform_2(%arg0: i32) -> (i32, i32) {
    %c0_i32 = arith.constant 0 : i32
    %c0_i32_0 = arith.constant 0 : i32
    %c0_i32_1 = arith.constant 0 : i32
    return %c0_i32, %c0_i32_0 : i32, i32
  }
  func.func @transform_3(%arg0: i32) -> (i32, i32) {
    %c0_i32 = arith.constant 0 : i32
    %c0_i32_0 = arith.constant 0 : i32
    %c0_i32_1 = arith.constant 0 : i32
    return %c0_i32, %c0_i32_0 : i32, i32
  }
  func.func @transform_4(%arg0: i32) -> (i32, i32) {
    %c0_i32 = arith.constant 0 : i32
    %c0_i32_0 = arith.constant 0 : i32
    %c0_i32_1 = arith.constant 0 : i32
    return %c0_i32, %c0_i32_0 : i32, i32
  }
  func.func @transform_5(%arg0: i32) -> (i32, i32) {
    %c0_i32 = arith.constant 0 : i32
    %c0_i32_0 = arith.constant 0 : i32
    %c0_i32_1 = arith.constant 0 : i32
    return %c0_i32, %c0_i32_0 : i32, i32
  }
  func.func @transform_6(%arg0: i32) -> (i32, i32) {
    %c0_i32 = arith.constant 0 : i32
    %c0_i32_0 = arith.constant 0 : i32
    %c0_i32_1 = arith.constant 0 : i32
    return %c0_i32, %c0_i32_0 : i32, i32
  }
  func.func @transform_7(%arg0: i32) -> (i32, i32) {
    %c0_i32 = arith.constant 0 : i32
    %c0_i32_0 = arith.constant 0 : i32
    return %arg0, %c0_i32 : i32, i32
  }
  func.func @transform_8(%arg0: i32) -> (i32, i32) {
    %c0_i32 = arith.constant 0 : i32
    %c0_i32_0 = arith.constant 0 : i32
    return %arg0, %c0_i32 : i32, i32
  }
}

module attributes {stable_mosaic.version = 11 : i64} {
  func.func @kernel(%arg0: i32, %arg1: memref<16x16xf32, #tpu.memory_space<vmem>>, %arg2: memref<16x32xbf16, #tpu.memory_space<vmem>>, %arg3: memref<1x32xf32, #tpu.memory_space<vmem>>, %arg4: memref<32x32xbf16, #tpu.memory_space<vmem>>, %arg5: memref<1x32xf32, #tpu.memory_space<vmem>>, %arg6: memref<32x256xbf16, #tpu.memory_space<vmem>>, %arg7: memref<1x256xf32, #tpu.memory_space<vmem>>, %arg8: memref<16x128xf32, #tpu.memory_space<vmem>>, %arg9: memref<16x128xf32, #tpu.memory_space<vmem>>) attributes {dimension_semantics = [#tpu.dimension_semantics<parallel>], iteration_bounds = array<i64: 2>, scalar_prefetch = 0 : i64, scratch_operands = 0 : i64, tpu.core_type = #tpu.core_type<tc>, window_params = [{transform_indices = @transform_0, window_bounds = array<i64: 16, 16>}, {pipeline_mode = #tpu.pipeline_mode<synchronous>, transform_indices = @transform_1, window_bounds = array<i64: 16, 32>}, {pipeline_mode = #tpu.pipeline_mode<synchronous>, transform_indices = @transform_2, window_bounds = array<i64: 1, 32>}, {pipeline_mode = #tpu.pipeline_mode<synchronous>, transform_indices = @transform_3, window_bounds = array<i64: 32, 32>}, {pipeline_mode = #tpu.pipeline_mode<synchronous>, transform_indices = @transform_4, window_bounds = array<i64: 1, 32>}, {pipeline_mode = #tpu.pipeline_mode<synchronous>, transform_indices = @transform_5, window_bounds = array<i64: 32, 256>}, {pipeline_mode = #tpu.pipeline_mode<synchronous>, transform_indices = @transform_6, window_bounds = array<i64: 1, 256>}, {transform_indices = @transform_7, window_bounds = array<i64: 16, 128>}, {transform_indices = @transform_8, window_bounds = array<i64: 16, 128>}]} {
    %c0 = arith.constant 0 : index
    %c0_0 = arith.constant 0 : index
    %0 = vector.load %arg1[%c0, %c0_0] : memref<16x16xf32, #tpu.memory_space<vmem>>, vector<16x16xf32>
    %1 = arith.truncf %0 : vector<16x16xf32> to vector<16x16xbf16>
    %c0_1 = arith.constant 0 : index
    %c0_2 = arith.constant 0 : index
    %2 = vector.load %arg2[%c0_1, %c0_2] : memref<16x32xbf16, #tpu.memory_space<vmem>>, vector<16x32xbf16>
    %cst = arith.constant dense<0.000000e+00> : vector<16x32xf32>
    %3 = tpu.matmul %1, %2, %cst {dimension_numbers = #tpu.dot_dimension_numbers<[1], [0], [0], [1], [0, 0, 1, 1], [], []>} : vector<16x16xbf16>, vector<16x32xbf16>, vector<16x32xf32> -> vector<16x32xf32>
    %c0_3 = arith.constant 0 : index
    %c0_4 = arith.constant 0 : index
    %4 = vector.load %arg3[%c0_3, %c0_4] : memref<1x32xf32, #tpu.memory_space<vmem>>, vector<1x32xf32>
    %5 = vector.broadcast %4 : vector<1x32xf32> to vector<16x32xf32>
    %6 = arith.addf %3, %5 : vector<16x32xf32>
    %cst_5 = arith.constant 0.000000e+00 : f32
    %7 = vector.broadcast %cst_5 : f32 to vector<16x32xf32>
    %8 = arith.maximumf %6, %7 : vector<16x32xf32>
    %9 = arith.truncf %8 : vector<16x32xf32> to vector<16x32xbf16>
    %c0_6 = arith.constant 0 : index
    %c0_7 = arith.constant 0 : index
    %10 = vector.load %arg4[%c0_6, %c0_7] : memref<32x32xbf16, #tpu.memory_space<vmem>>, vector<32x32xbf16>
    %cst_8 = arith.constant dense<0.000000e+00> : vector<16x32xf32>
    %11 = tpu.matmul %9, %10, %cst_8 {dimension_numbers = #tpu.dot_dimension_numbers<[1], [0], [0], [1], [0, 0, 1, 1], [], []>} : vector<16x32xbf16>, vector<32x32xbf16>, vector<16x32xf32> -> vector<16x32xf32>
    %c0_9 = arith.constant 0 : index
    %c0_10 = arith.constant 0 : index
    %12 = vector.load %arg5[%c0_9, %c0_10] : memref<1x32xf32, #tpu.memory_space<vmem>>, vector<1x32xf32>
    %13 = vector.broadcast %12 : vector<1x32xf32> to vector<16x32xf32>
    %14 = arith.addf %11, %13 : vector<16x32xf32>
    %cst_11 = arith.constant 0.000000e+00 : f32
    %15 = vector.broadcast %cst_11 : f32 to vector<16x32xf32>
    %16 = arith.maximumf %14, %15 : vector<16x32xf32>
    %17 = arith.truncf %16 : vector<16x32xf32> to vector<16x32xbf16>
    %c0_12 = arith.constant 0 : index
    %c0_13 = arith.constant 0 : index
    %18 = vector.load %arg6[%c0_12, %c0_13] : memref<32x256xbf16, #tpu.memory_space<vmem>>, vector<32x256xbf16>
    %cst_14 = arith.constant dense<0.000000e+00> : vector<16x256xf32>
    %19 = tpu.matmul %17, %18, %cst_14 {dimension_numbers = #tpu.dot_dimension_numbers<[1], [0], [0], [1], [0, 0, 1, 1], [], []>} : vector<16x32xbf16>, vector<32x256xbf16>, vector<16x256xf32> -> vector<16x256xf32>
    %c0_15 = arith.constant 0 : index
    %c0_16 = arith.constant 0 : index
    %20 = vector.load %arg7[%c0_15, %c0_16] : memref<1x256xf32, #tpu.memory_space<vmem>>, vector<1x256xf32>
    %21 = vector.broadcast %20 : vector<1x256xf32> to vector<16x256xf32>
    %22 = arith.addf %19, %21 : vector<16x256xf32>
    %23 = vector.extract_strided_slice %22 {offsets = [0, 0], sizes = [16, 128], strides = [1, 1]} : vector<16x256xf32> to vector<16x128xf32>
    %c0_17 = arith.constant 0 : index
    %c0_18 = arith.constant 0 : index
    %24 = vector.load %arg8[%c0_17, %c0_18] : memref<16x128xf32, #tpu.memory_space<vmem>>, vector<16x128xf32>
    tpu.vector_store %arg8[%c0_17, %c0_18], %23 {strides = array<i32>} : memref<16x128xf32, #tpu.memory_space<vmem>>, vector<16x128xf32>,
    %25 = vector.extract_strided_slice %22 {offsets = [0, 128], sizes = [16, 128], strides = [1, 1]} : vector<16x256xf32> to vector<16x128xf32>
    %cst_19 = arith.constant 0.000000e+00 : f32
    %26 = vector.broadcast %cst_19 : f32 to vector<16x128xf32>
    %27 = arith.maximumf %25, %26 : vector<16x128xf32>
    %28 = math.absf %25 : vector<16x128xf32>
    %cst_20 = arith.constant 0.000000e+00 : f32
    %29 = vector.broadcast %cst_20 : f32 to vector<16x128xf32>
    %30 = arith.subf %29, %28 : vector<16x128xf32>
    %31 = math.exp %30 : vector<16x128xf32>
    %32 = math.log1p %31 : vector<16x128xf32>
    %33 = arith.addf %27, %32 : vector<16x128xf32>
    %cst_21 = arith.constant 9.99999997E-7 : f32
    %34 = vector.broadcast %cst_21 : f32 to vector<16x128xf32>
    %35 = arith.addf %33, %34 : vector<16x128xf32>
    %c0_22 = arith.constant 0 : index
    %c0_23 = arith.constant 0 : index
    %36 = vector.load %arg9[%c0_22, %c0_23] : memref<16x128xf32, #tpu.memory_space<vmem>>, vector<16x128xf32>
    tpu.vector_store %arg9[%c0_22, %c0_23], %35 {strides = array<i32>} : memref<16x128xf32, #tpu.memory_space<vmem>>, vector<16x128xf32>,
    return
  }
  func.func @transform_0(%arg0: i32) -> (i32, i32) {
    %c0_i32 = arith.constant 0 : i32
    %c0_i32_0 = arith.constant 0 : i32
    return %arg0, %c0_i32 : i32, i32
  }
  func.func @transform_1(%arg0: i32) -> (i32, i32) {
    %c0_i32 = arith.constant 0 : i32
    %c0_i32_0 = arith.constant 0 : i32
    %c0_i32_1 = arith.constant 0 : i32
    return %c0_i32, %c0_i32_0 : i32, i32
  }
  func.func @transform_2(%arg0: i32) -> (i32, i32) {
    %c0_i32 = arith.constant 0 : i32
    %c0_i32_0 = arith.constant 0 : i32
    %c0_i32_1 = arith.constant 0 : i32
    return %c0_i32, %c0_i32_0 : i32, i32
  }
  func.func @transform_3(%arg0: i32) -> (i32, i32) {
    %c0_i32 = arith.constant 0 : i32
    %c0_i32_0 = arith.constant 0 : i32
    %c0_i32_1 = arith.constant 0 : i32
    return %c0_i32, %c0_i32_0 : i32, i32
  }
  func.func @transform_4(%arg0: i32) -> (i32, i32) {
    %c0_i32 = arith.constant 0 : i32
    %c0_i32_0 = arith.constant 0 : i32
    %c0_i32_1 = arith.constant 0 : i32
    return %c0_i32, %c0_i32_0 : i32, i32
  }
  func.func @transform_5(%arg0: i32) -> (i32, i32) {
    %c0_i32 = arith.constant 0 : i32
    %c0_i32_0 = arith.constant 0 : i32
    %c0_i32_1 = arith.constant 0 : i32
    return %c0_i32, %c0_i32_0 : i32, i32
  }
  func.func @transform_6(%arg0: i32) -> (i32, i32) {
    %c0_i32 = arith.constant 0 : i32
    %c0_i32_0 = arith.constant 0 : i32
    %c0_i32_1 = arith.constant 0 : i32
    return %c0_i32, %c0_i32_0 : i32, i32
  }
  func.func @transform_7(%arg0: i32) -> (i32, i32) {
    %c0_i32 = arith.constant 0 : i32
    %c0_i32_0 = arith.constant 0 : i32
    return %arg0, %c0_i32 : i32, i32
  }
  func.func @transform_8(%arg0: i32) -> (i32, i32) {
    %c0_i32 = arith.constant 0 : i32
    %c0_i32_0 = arith.constant 0 : i32
    return %arg0, %c0_i32 : i32, i32
  }
}

</mosaic_0001>

<llo_original>
// kernel: tpu_custom_call.1
$region0: #{tpu_custom_call.1}
  #allocation0 [shape = 'u32[]', space=smem, size = 0x4, offset = 0x4, fixed_abs, tag = 'smem constant byte address 0x4 - core index']
  #allocation1 [shape = 'u32[72,128]{1,0:T(1,128)}', space=vmem, size = 0x9000, scoped, tag = 'internal scratch']
  %s0 = inlined_call_operand.vmem [shape: f32[32,16], index: 0, kind: input, shape index: {}]
  %s1 = inlined_call_operand.hbm [shape: bf16[16,32], index: 1, kind: input, shape index: {}]
  %s2 = inlined_call_operand.vmem [shape: f32[1,32], index: 2, kind: input, shape index: {}]
  %s3 = inlined_call_operand.vmem [shape: bf16[32,32], index: 3, kind: input, shape index: {}]
  %s4 = inlined_call_operand.vmem [shape: f32[1,32], index: 4, kind: input, shape index: {}]
  %s5 = inlined_call_operand.vmem [shape: bf16[32,256], index: 5, kind: input, shape index: {}]
  %s6 = inlined_call_operand.vmem [shape: f32[1,256], index: 6, kind: input, shape index: {}]
  %s7 = inlined_call_operand.hbm [shape: f32[32,128], index: 7, kind: output, shape index: {0}]
  %s8 = inlined_call_operand.hbm [shape: f32[32,128], index: 8, kind: output, shape index: {1}]
  %9 = xla_tuple %s7, %s8
  %s10 = sld [smem:[#allocation0]]
  $region73: #{tpu_custom_call.1} parent=0
    _
  %s12 = ssub.s32 1, %s10
  %s13 = scalar_select 0, %s12, %s10
  $region1: #{tpu_custom_call.1} parent=0
    #allocation2 [shape = 'u8[4096]{0}', space=vmem, size = 0x1000, scoped, tag = 'input window, operand 1, single buffered']
    #allocation3 [shape = 's32[2]{0}', space=sflag, size = 0x8, scoped, tag = 'scoped memory for tpu_custom_call.1']
    #allocation4 [shape = 's32[2]{0}', space=sflag, size = 0x8, scoped, tag = 'scoped memory for tpu_custom_call.1']
    #allocation5 [shape = 'u8[16384]{0}', space=vmem, size = 0x4000, scoped, tag = 'output window, operand 0']
    #allocation6 [shape = 'u8[16384]{0}', space=vmem, size = 0x4000, scoped, tag = 'output window, operand 1']
    #allocation7 [shape = 's32[2]{0}', space=sflag, size = 0x8, scoped, tag = 'scoped memory for tpu_custom_call.1']
    %14 = vsyncpa [#allocation3], 0
    %15 = vsyncpa [#allocation4], 0
    %s16 = scalar_lea.sflag [#allocation4], 1
    %17 = vsyncpa %s16, 0
    %18 = vsyncpa [#allocation7], 0
    %s19 = scalar_lea.sflag [#allocation7], 1
    %20 = vsyncpa %s19, 0
    loop: start=0, step=1, limit=4
    $region2: #{tpu_custom_call.1} parent=1 // loop_pre_header
      _
    $region3: #{tpu_custom_call.1} parent=1 // loop_header
      %s22 = sphi 0, %s26
      %p23 = scmp.ge.s32.totalorder %s22, 4
      %s32 = sphi 0, %s34
      %s35 = sphi 0, %s32
      %s36 = sphi 0, %s35
      %s52 = sphi 0, %s36
      %s56 = sphi 0, %s56
      %s58 = sphi 0, %s56
      %s59 = sphi 0, %s58
      %s73 = sphi 0, %s59
      %s77 = sphi 0, %s77
      %s79 = sphi 0, %s77
      %s80 = sphi 0, %s79
      %s94 = sphi 0, %s80
      %s98 = sphi 0, %s98
      %s100 = sphi 0, %s98
      %s101 = sphi 0, %s100
      %s115 = sphi 0, %s101
      %s119 = sphi 0, %s119
      %s121 = sphi 0, %s119
      %s122 = sphi 0, %s121
      %s136 = sphi 0, %s122
      %s140 = sphi 0, %s140
      %s142 = sphi 0, %s140
      %s143 = sphi 0, %s142
      %s157 = sphi 0, %s143
      %s161 = sphi 0, %s161
      %s163 = sphi 0, %s161
      %s164 = sphi 0, %s163
      %s178 = sphi 0, %s164
      %s184 = sphi 0, %s186
      %s187 = sphi 0, %s184
      %s188 = sphi 0, %s187
      %s204 = sphi 0, %s188
      %s210 = sphi 0, %s212
      %s213 = sphi 0, %s210
      %s214 = sphi 0, %s213
      %s230 = sphi 0, %s214
    $region4: #{tpu_custom_call.1} parent=1 // loop_header_branch
      %25 = sbr.rel (%p23) target = $region8
    $region5: #{tpu_custom_call.1} parent=1 // loop_body
      %s27 = ssub.s32 %s22, 1
      %s28 = ssub.s32 %s22, 2
      %s29 = sadd.s32 %s22, 1
      %s30 = ssub.s32 %s22, %s29
      %p31 = scmp.eq.s32.totalorder %s30, 0
      %s33 = sadd.s32 %s32, 1
      %s34 = scalar_select %p31, %s32, %s33
      %p37 = pneg %p31
      %p38 = scmp.eq.s32.totalorder %s22, 1
      %p39 = por %p37, %p38
      %p40 = scmp.ne.s32.totalorder %s32, %s35
      %p41 = scmp.eq.s32.totalorder %s22, 0
      %p42 = por %p40, %p41
      %p43 = scmp.ne.s32.totalorder %s32, %s35
      %p44 = scmp.eq.s32.totalorder %s27, 1
      %p45 = por %p43, %p44
      %p46 = scmp.ne.s32.totalorder %s35, %s36
      %p47 = scmp.eq.s32.totalorder %s27, 0
      %p48 = por %p46, %p47
      %p49 = scmp.ne.s32.totalorder %s35, %s36
      %p50 = scmp.eq.s32.totalorder %s28, 1
      %p51 = por %p49, %p50
      %p53 = scmp.ne.s32.totalorder %s36, %s52
      %p54 = scmp.eq.s32.totalorder %s28, 0
      %p55 = por %p53, %p54
      %s57 = sadd.s32 %s56, 1
      %p60 = scmp.eq.s32.totalorder %s22, 1
      %p61 = scmp.ne.s32.totalorder %s56, %s58
      %p62 = scmp.eq.s32.totalorder %s22, 0
      %p63 = por %p61, %p62
      %p64 = scmp.ne.s32.totalorder %s56, %s58
      %p65 = scmp.eq.s32.totalorder %s27, 1
      %p66 = por %p64, %p65
      %p67 = scmp.ne.s32.totalorder %s58, %s59
      %p68 = scmp.eq.s32.totalorder %s27, 0
      %p69 = por %p67, %p68
      %p70 = scmp.ne.s32.totalorder %s58, %s59
      %p71 = scmp.eq.s32.totalorder %s28, 1
      %p72 = por %p70, %p71
      %p74 = scmp.ne.s32.totalorder %s59, %s73
      %p75 = scmp.eq.s32.totalorder %s28, 0
      %p76 = por %p74, %p75
      %s78 = sadd.s32 %s77, 1
      %p81 = scmp.eq.s32.totalorder %s22, 1
      %p82 = scmp.ne.s32.totalorder %s77, %s79
      %p83 = scmp.eq.s32.totalorder %s22, 0
      %p84 = por %p82, %p83
      %p85 = scmp.ne.s32.totalorder %s77, %s79
      %p86 = scmp.eq.s32.totalorder %s27, 1
      %p87 = por %p85, %p86
      %p88 = scmp.ne.s32.totalorder %s79, %s80
      %p89 = scmp.eq.s32.totalorder %s27, 0
      %p90 = por %p88, %p89
      %p91 = scmp.ne.s32.totalorder %s79, %s80
      %p92 = scmp.eq.s32.totalorder %s28, 1
      %p93 = por %p91, %p92
      %p95 = scmp.ne.s32.totalorder %s80, %s94
      %p96 = scmp.eq.s32.totalorder %s28, 0
      %p97 = por %p95, %p96
      %s99 = sadd.s32 %s98, 1
      %p102 = scmp.eq.s32.totalorder %s22, 1
      %p103 = scmp.ne.s32.totalorder %s98, %s100
      %p104 = scmp.eq.s32.totalorder %s22, 0
      %p105 = por %p103, %p104
      %p106 = scmp.ne.s32.totalorder %s98, %s100
      %p107 = scmp.eq.s32.totalorder %s27, 1
      %p108 = por %p106, %p107
      %p109 = scmp.ne.s32.totalorder %s100, %s101
      %p110 = scmp.eq.s32.totalorder %s27, 0
      %p111 = por %p109, %p110
      %p112 = scmp.ne.s32.totalorder %s100, %s101
      %p113 = scmp.eq.s32.totalorder %s28, 1
      %p114 = por %p112, %p113
      %p116 = scmp.ne.s32.totalorder %s101, %s115
      %p117 = scmp.eq.s32.totalorder %s28, 0
      %p118 = por %p116, %p117
      %s120 = sadd.s32 %s119, 1
      %p123 = scmp.eq.s32.totalorder %s22, 1
      %p124 = scmp.ne.s32.totalorder %s119, %s121
      %p125 = scmp.eq.s32.totalorder %s22, 0
      %p126 = por %p124, %p125
      %p127 = scmp.ne.s32.totalorder %s119, %s121
      %p128 = scmp.eq.s32.totalorder %s27, 1
      %p129 = por %p127, %p128
      %p130 = scmp.ne.s32.totalorder %s121, %s122
      %p131 = scmp.eq.s32.totalorder %s27, 0
      %p132 = por %p130, %p131
      %p133 = scmp.ne.s32.totalorder %s121, %s122
      %p134 = scmp.eq.s32.totalorder %s28, 1
      %p135 = por %p133, %p134
      %p137 = scmp.ne.s32.totalorder %s122, %s136
      %p138 = scmp.eq.s32.totalorder %s28, 0
      %p139 = por %p137, %p138
      %s141 = sadd.s32 %s140, 1
      %p144 = scmp.eq.s32.totalorder %s22, 1
      %p145 = scmp.ne.s32.totalorder %s140, %s142
      %p146 = scmp.eq.s32.totalorder %s22, 0
      %p147 = por %p145, %p146
      %p148 = scmp.ne.s32.totalorder %s140, %s142
      %p149 = scmp.eq.s32.totalorder %s27, 1
      %p150 = por %p148, %p149
      %p151 = scmp.ne.s32.totalorder %s142, %s143
      %p152 = scmp.eq.s32.totalorder %s27, 0
      %p153 = por %p151, %p152
      %p154 = scmp.ne.s32.totalorder %s142, %s143
      %p155 = scmp.eq.s32.totalorder %s28, 1
      %p156 = por %p154, %p155
      %p158 = scmp.ne.s32.totalorder %s143, %s157
      %p159 = scmp.eq.s32.totalorder %s28, 0
      %p160 = por %p158, %p159
      %s162 = sadd.s32 %s161, 1
      %p165 = scmp.eq.s32.totalorder %s22, 1
      %p166 = scmp.ne.s32.totalorder %s161, %s163
      %p167 = scmp.eq.s32.totalorder %s22, 0
      %p168 = por %p166, %p167
      %p169 = scmp.ne.s32.totalorder %s161, %s163
      %p170 = scmp.eq.s32.totalorder %s27, 1
      %p171 = por %p169, %p170
      %p172 = scmp.ne.s32.totalorder %s163, %s164
      %p173 = scmp.eq.s32.totalorder %s27, 0
      %p174 = por %p172, %p173
      %p175 = scmp.ne.s32.totalorder %s163, %s164
      %p176 = scmp.eq.s32.totalorder %s28, 1
      %p177 = por %p175, %p176
      %p179 = scmp.ne.s32.totalorder %s164, %s178
      %p180 = scmp.eq.s32.totalorder %s28, 0
      %p181 = por %p179, %p180
      %s182 = ssub.s32 %s22, %s29
      %p183 = scmp.eq.s32.totalorder %s182, 0
      %s185 = sadd.s32 %s184, 1
      %s186 = scalar_select %p183, %s184, %s185
      %p189 = pneg %p183
      %p190 = scmp.eq.s32.totalorder %s22, 1
      %p191 = por %p189, %p190
      %p192 = scmp.ne.s32.totalorder %s184, %s187
      %p193 = scmp.eq.s32.totalorder %s22, 0
      %p194 = por %p192, %p193
      %p195 = scmp.ne.s32.totalorder %s184, %s187
      %p196 = scmp.eq.s32.totalorder %s27, 1
      %p197 = por %p195, %p196
      %p198 = scmp.ne.s32.totalorder %s187, %s188
      %p199 = scmp.eq.s32.totalorder %s27, 0
      %p200 = por %p198, %p199
      %p201 = scmp.ne.s32.totalorder %s187, %s188
      %p202 = scmp.eq.s32.totalorder %s28, 1
      %p203 = por %p201, %p202
      %p205 = scmp.ne.s32.totalorder %s188, %s204
      %p206 = scmp.eq.s32.totalorder %s28, 0
      %p207 = por %p205, %p206
      %s208 = ssub.s32 %s22, %s29
      %p209 = scmp.eq.s32.totalorder %s208, 0
      %s211 = sadd.s32 %s210, 1
      %s212 = scalar_select %p209, %s210, %s211
      %p215 = pneg %p209
      %p216 = scmp.eq.s32.totalorder %s22, 1
      %p217 = por %p215, %p216
      %p218 = scmp.ne.s32.totalorder %s210, %s213
      %p219 = scmp.eq.s32.totalorder %s22, 0
      %p220 = por %p218, %p219
      %p221 = scmp.ne.s32.totalorder %s210, %s213
      %p222 = scmp.eq.s32.totalorder %s27, 1
      %p223 = por %p221, %p222
      %p224 = scmp.ne.s32.totalorder %s213, %s214
      %p225 = scmp.eq.s32.totalorder %s27, 0
      %p226 = por %p224, %p225
      %p227 = scmp.ne.s32.totalorder %s213, %s214
      %p228 = scmp.eq.s32.totalorder %s28, 1
      %p229 = por %p227, %p228
      %p231 = scmp.ne.s32.totalorder %s214, %s230
      %p232 = scmp.eq.s32.totalorder %s28, 0
      %p233 = por %p231, %p232
      %p234 = scmp.le.s32.totalorder 1, %s22
      %p235 = scmp.lt.s32.totalorder %s22, 3
      %p236 = pnand %p234, %p235
      %p237 = pneg %p236
      // Predicated region
      $region9: #{tpu_custom_call.1} parent=5 // pred_check
        _
      $region10: #{tpu_custom_call.1} parent=5 // pred_check_branch
        %239 = sbr.rel (%p236) target = $region12
      $region11: #{tpu_custom_call.1} parent=5 // pred_region
        %s240 = ssub.s32 %s22, 1
        // Predicated region
        $region13: #{tpu_custom_call.1} parent=11 // pred_check
          %p241 = pneg %p69
        $region14: #{tpu_custom_call.1} parent=11 // pred_check_branch
          %243 = sbr.rel (%p241) target = $region16
        $region15: #{tpu_custom_call.1} parent=11 // pred_region
          %245 = vsyncadd [#allocation3], 0
          %s246 = sshll.u32 %s1, 4
          %s247 = int_to_ptr.hbm [resolvable:$true] %s246
          %s248 = sshll.u32 [#allocation2], 4
          %s249 = int_to_ptr.vmem [resolvable:$true] %s248
          %254 = dma.hbm_to_vmem [thread:$0]  %s247, 128, %s249, [#allocation3], 64, 64, 4
        $region16: #{tpu_custom_call.1} parent=11 // pred_fallthru
          _
        // Predicated region
        $region17: #{tpu_custom_call.1} parent=11 // pred_check
          %p255 = pneg %p90
        $region18: #{tpu_custom_call.1} parent=11 // pred_check_branch
          %257 = sbr.rel (%p255) target = $region20
        $region19: #{tpu_custom_call.1} parent=11 // pred_region
          _
        $region20: #{tpu_custom_call.1} parent=11 // pred_fallthru
          _
        // Predicated region
        $region21: #{tpu_custom_call.1} parent=11 // pred_check
          %p258 = pneg %p111
        $region22: #{tpu_custom_call.1} parent=11 // pred_check_branch
          %260 = sbr.rel (%p258) target = $region24
        $region23: #{tpu_custom_call.1} parent=11 // pred_region
          _
        $region24: #{tpu_custom_call.1} parent=11 // pred_fallthru
          _
        // Predicated region
        $region25: #{tpu_custom_call.1} parent=11 // pred_check
          %p261 = pneg %p132
        $region26: #{tpu_custom_call.1} parent=11 // pred_check_branch
          %263 = sbr.rel (%p261) target = $region28
        $region27: #{tpu_custom_call.1} parent=11 // pred_region
          _
        $region28: #{tpu_custom_call.1} parent=11 // pred_fallthru
          _
        // Predicated region
        $region29: #{tpu_custom_call.1} parent=11 // pred_check
          %p264 = pneg %p153
        $region30: #{tpu_custom_call.1} parent=11 // pred_check_branch
          %266 = sbr.rel (%p264) target = $region32
        $region31: #{tpu_custom_call.1} parent=11 // pred_region
          _
        $region32: #{tpu_custom_call.1} parent=11 // pred_fallthru
          _
        // Predicated region
        $region33: #{tpu_custom_call.1} parent=11 // pred_check
          %p267 = pneg %p174
        $region34: #{tpu_custom_call.1} parent=11 // pred_check_branch
          %269 = sbr.rel (%p267) target = $region36
        $region35: #{tpu_custom_call.1} parent=11 // pred_region
          _
        $region36: #{tpu_custom_call.1} parent=11 // pred_fallthru
          _
      $region12: #{tpu_custom_call.1} parent=5 // pred_fallthru
        _
      %p270 = scmp.lt.s32.totalorder %s22, 2
      // Predicated region
      $region37: #{tpu_custom_call.1} parent=5 // pred_check
        %p271 = pneg %p270
      $region38: #{tpu_custom_call.1} parent=5 // pred_check_branch
        %273 = sbr.rel (%p271) target = $region40
      $region39: #{tpu_custom_call.1} parent=5 // pred_region
        // Predicated region
        $region41: #{tpu_custom_call.1} parent=39 // pred_check
          %p274 = pneg %p42
        $region42: #{tpu_custom_call.1} parent=39 // pred_check_branch
          %276 = sbr.rel (%p274) target = $region44
        $region43: #{tpu_custom_call.1} parent=39 // pred_region
          %s277 = smul.u32 2, %s22
          %p278 = scmp.lt.s32.totalorder %s277, 3
          %s279 = scalar_select %p278, %s277, 3
          %s280 = smul.addr %s279, 8
          %s281 = scalar_lea.vmem %s0, %s280
          %s282 = smul.u32 2, %s22
        $region44: #{tpu_custom_call.1} parent=39 // pred_fallthru
          _
      $region40: #{tpu_custom_call.1} parent=5 // pred_fallthru
        _
      %p283 = scmp.le.s32.totalorder 1, %s22
      %p284 = scmp.lt.s32.totalorder %s22, 3
      %p285 = pnand %p283, %p284
      %p286 = pneg %p285
      // Predicated region
      $region45: #{tpu_custom_call.1} parent=5 // pred_check
        _
      $region46: #{tpu_custom_call.1} parent=5 // pred_check_branch
        %288 = sbr.rel (%p285) target = $region48
      $region47: #{tpu_custom_call.1} parent=5 // pred_region
        %s289 = ssub.s32 %s22, 1
        // Predicated region
        $region49: #{tpu_custom_call.1} parent=47 // pred_check
          %p290 = pneg %p69
        $region50: #{tpu_custom_call.1} parent=47 // pred_check_branch
          %292 = sbr.rel (%p290) target = $region52
        $region51: #{tpu_custom_call.1} parent=47 // pred_region
          %294 = dma.done [#allocation3], 128
        $region52: #{tpu_custom_call.1} parent=47 // pred_fallthru
          _
        %s295 = smul.u32 2, %s27
        %p296 = scmp.lt.s32.totalorder %s295, 3
        %s297 = scalar_select %p296, %s295, 3
        %s298 = smul.addr %s297, 8
        %s299 = scalar_lea.vmem %s0, %s298
        %p300 = pneg %p48
        %p301 = pneg %p45
        %p302 = pneg %p69
        %p303 = pneg %p66
        %p304 = pneg %p90
        %p305 = pneg %p87
        %p306 = pneg %p111
        %p307 = pneg %p108
        %p308 = pneg %p132
        %p309 = pneg %p129
        %p310 = pneg %p153
        %p311 = pneg %p150
        %p312 = pneg %p174
        %p313 = pneg %p171
        %p314 = pneg %p200
        %p315 = pneg %p197
        %s316 = sand.u32 %s187, 1
        %s317 = scalar_lea.sflag [#allocation4], %s316
        %s318 = sand.u32 %s187, 1
        %s319 = smul.addr %s318, 16
        %s320 = scalar_lea.vmem [#allocation5], %s319
        %p321 = pneg %p226
        %p322 = pneg %p223
        %s323 = sand.u32 %s213, 1
        %s324 = scalar_lea.sflag [#allocation7], %s323
        %s325 = sand.u32 %s213, 1
        %s326 = smul.addr %s325, 16
        %s327 = scalar_lea.vmem [#allocation6], %s326
        %s328 = smul.u32 2, %s27
        %p329 = scmp.lt.s32.totalorder %s328, 3
        %s330 = scalar_select %p329, %s328, 3
        %s331 = smul.addr %s330, 8
        %s332 = scalar_lea.vmem %s0, %s331
        %s333 = smul.u32 2, %s27
        %s334 = smul.u32 2, %s27
        %s335 = smul.u32 2, %s27
        %v337 = vld [vmem:[%s332] sm:$0xff]
        %v338 = vld [vmem:[%s332 + $0x8] sm:$0xff]
        %v339 = vpack.c.bf16 %v338, %v337
        %v340 = vld [vmem:[#allocation2] sm:$0xf]
        %v341 = vld [vmem:[#allocation2 + $0x4] sm:$0xf]
        %v342 = vld [vmem:[%s2] sm:$0x1]
        %v344 = vperm.slane %v342, 0
        %v348 = vunpack.c.l.b16 %v340
        %v349 = vunpack.c.l.b16 %v341
        %v350 = vpack.c.b16 %v349, %v348
        %vm352 = vcmask 130048
        %v354 = vsel %vm352, %v339, 0
        %356 = vmatpush.bf16.msra.mxu0 0
        %357 = vmatpush.bf16.msra.mxu0 0
        %358 = vmatpush.bf16.msra.mxu0 0
        %359 = vmatpush.bf16.msra.mxu0 0
        %360 = vmatpush.bf16.msra.mxu0 0
        %361 = vmatpush.bf16.msra.mxu0 0
        %362 = vmatpush.bf16.msra.mxu0 0
        %363 = vmatpush.bf16.msra.mxu0 %v350
        %364 = vmatmul.bf16.gmra.mxu0 %v354
        %v365 = vpop.f32.mrf.mxu0
        %v366 = vadd.f32 %v344, %v365
        %v367 = vpop.f32.mrf.mxu0
        %v368 = vadd.f32 %v344, %v367
        %369 = vdwg.mxu0
        %v370 = vmax.f32 %v366, 0.0
        %v371 = vmax.f32 %v368, 0.0
        %v372 = vpack.c.bf16 %v371, %v370
        %v373 = vld [vmem:[%s3] sm:$0xf]
        %v374 = vld [vmem:[%s3 + $0x4] sm:$0xf]
        %v375 = vld [vmem:[%s3 + $0x8] sm:$0xf]
        %v376 = vld [vmem:[%s3 + $0xc] sm:$0xf]
        %v377 = vld [vmem:[%s4] sm:$0x1]
        %v379 = vperm.slane %v377, 0
        %v385 = vunpack.c.l.b16 %v373
        %v386 = vunpack.c.l.b16 %v374
        %v387 = vunpack.c.l.b16 %v375
        %v388 = vunpack.c.l.b16 %v376
        %v389 = vpack.c.b16 %v386, %v385
        %v390 = vpack.c.b16 %v388, %v387
        %vm393 = vcmask 261120
        %v395 = vsel %vm393, %v372, 0
        %397 = vmatpush.bf16.msra.mxu0 0
        %398 = vmatpush.bf16.msra.mxu0 0
        %399 = vmatpush.bf16.msra.mxu0 0
        %400 = vmatpush.bf16.msra.mxu0 0
        %401 = vmatpush.bf16.msra.mxu0 0
        %402 = vmatpush.bf16.msra.mxu0 0
        %403 = vmatpush.bf16.msra.mxu0 %v390
        %404 = vmatpush.bf16.msra.mxu0 %v389
        %405 = vmatmul.bf16.gmra.mxu0 %v395
        %v406 = vpop.f32.mrf.mxu0
        %v407 = vadd.f32 %v379, %v406
        %v408 = vpop.f32.mrf.mxu0
        %v409 = vadd.f32 %v379, %v408
        %410 = vdwg.mxu0
        %v411 = vmax.f32 %v407, 0.0
        %v412 = vmax.f32 %v409, 0.0
        %v413 = vpack.c.bf16 %v412, %v411
        %v414 = vld [vmem:[%s5] sm:$0xff]
        %v415 = vld [vmem:[%s5 + $0x8] sm:$0xff]
        %v416 = vld [vmem:[%s5 + $0x10] sm:$0xff]
        %v417 = vld [vmem:[%s5 + $0x18] sm:$0xff]
        %v418 = vld [vmem:[%s6] sm:$0x3]
        %v420 = vperm.slane %v418, 0
        %v421 = vperm.slane %v418, 1
        %v428 = vunpack.c.l.b16 %v414
        %v429 = vunpack.c.h.b16 %v414
        %v430 = vunpack.c.l.b16 %v415
        %v431 = vunpack.c.h.b16 %v415
        %v432 = vunpack.c.l.b16 %v416
        %v433 = vunpack.c.h.b16 %v416
        %v434 = vunpack.c.l.b16 %v417
        %v435 = vunpack.c.h.b16 %v417
        %v436 = vpack.c.b16 %v430, %v428
        %v437 = vpack.c.b16 %v431, %v429
        %v438 = vpack.c.b16 %v434, %v432
        %v439 = vpack.c.b16 %v435, %v433
        %v445 = vsel %vm393, %v413, 0
        %447 = vmatpush.bf16.msra.mxu0 0
        %448 = vmatpush.bf16.msra.mxu0 0
        %449 = vmatpush.bf16.msra.mxu0 0
        %450 = vmatpush.bf16.msra.mxu0 0
        %451 = vmatpush.bf16.msra.mxu0 0
        %452 = vmatpush.bf16.msra.mxu0 0
        %453 = vmatpush.bf16.msra.mxu0 %v438
        %454 = vmatpush.bf16.msra.mxu0 %v436
        %455 = vmatmul.bf16.gmra.mxu0 %v445
        %v456 = vpop.f32.mrf.mxu0
        %v457 = vadd.f32 %v420, %v456
        %v458 = vpop.f32.mrf.mxu0
        %v459 = vadd.f32 %v420, %v458
        %460 = vdwg.mxu0
        %461 = vmatpush.bf16.msra.mxu0 0
        %462 = vmatpush.bf16.msra.mxu0 0
        %463 = vmatpush.bf16.msra.mxu0 0
        %464 = vmatpush.bf16.msra.mxu0 0
        %465 = vmatpush.bf16.msra.mxu0 0
        %466 = vmatpush.bf16.msra.mxu0 0
        %467 = vmatpush.bf16.msra.mxu0 %v439
        %468 = vmatpush.bf16.msra.mxu0 %v437
        %469 = vmatmul.bf16.gmra.mxu0 %v445
        %v470 = vpop.f32.mrf.mxu0
        %v471 = vadd.f32 %v421, %v470
        %v472 = vpop.f32.mrf.mxu0
        %v473 = vadd.f32 %v421, %v472
        %474 = vdwg.mxu0
        %475 = vst [vmem:[%s320] sm:$0xff] %v457
        %476 = vst [vmem:[%s320 + $0x8] sm:$0xff] %v459
        %v477 = vmax.f32 %v471, 0.0
        %v478 = vmax.f32 %v473, 0.0
        %v479 = vand.u32 2147483647, %v471
        %v480 = vand.u32 2147483647, %v473
        %v481 = vsub.f32 0.0, %v479
        %v482 = vsub.f32 0.0, %v480
        %v483 = vmul.f32 %v481, 1.442695
        %v484 = vpow.pop %v483
        %v485 = vmul.f32 %v482, 1.442695
        %v486 = vpow.pop %v485
        %v487 = vadd.f32 %v484, 1.0
        %v488 = vlog2.pop %v487
        %v489 = vmul.f32 %v488, 0.6931472
        %v490 = vmul.f32 -0.5, %v484
        %v491 = vadd.f32 %v490, 1.0
        %v492 = vmul.f32 %v491, %v484
        %v493 = vand.u32 2147483647, %v484
        %vm494 = vcmp.lt.f32.partialorder %v493, 0.0004427343
        %v495 = vsel %vm494, %v492, %v489
        %v496 = vadd.f32 %v486, 1.0
        %v497 = vlog2.pop %v496
        %v498 = vmul.f32 %v497, 0.6931472
        %v499 = vmul.f32 -0.5, %v486
        %v500 = vadd.f32 %v499, 1.0
        %v501 = vmul.f32 %v500, %v486
        %v502 = vand.u32 2147483647, %v486
        %vm503 = vcmp.lt.f32.partialorder %v502, 0.0004427343
        %v504 = vsel %vm503, %v501, %v498
        %v505 = vadd.f32 %v477, %v495
        %v506 = vadd.f32 %v478, %v504
        %v507 = vadd.f32 %v505, 1e-06
        %v508 = vadd.f32 %v506, 1e-06
        %509 = vst [vmem:[%s327] sm:$0xff] %v507
        %510 = vst [vmem:[%s327 + $0x8] sm:$0xff] %v508
        %s511 = sand.u32 %s187, 1
        %s512 = scalar_lea.sflag [#allocation4], %s511
        %s513 = sand.u32 %s187, 1
        %s514 = smul.addr %s513, 16
        %s515 = scalar_lea.vmem [#allocation5], %s514
        %s516 = sand.u32 %s213, 1
        %s517 = scalar_lea.sflag [#allocation7], %s516
        %s518 = sand.u32 %s213, 1
        %s519 = smul.addr %s518, 16
        %s520 = scalar_lea.vmem [#allocation6], %s519
        // Predicated region
        $region53: #{tpu_custom_call.1} parent=47 // pred_check
          %p521 = pneg %p197
        $region54: #{tpu_custom_call.1} parent=47 // pred_check_branch
          %523 = sbr.rel (%p521) target = $region56
        $region55: #{tpu_custom_call.1} parent=47 // pred_region
          %s524 = smul.u32 2, %s27
          %526 = vsyncadd %s512, 0
          %s527 = smul.addr %s524, 8
          %s528 = scalar_lea.hbm %s7, %s527
          %s529 = sshll.u32 %s515, 4
          %s530 = int_to_ptr.vmem [resolvable:$true] %s529
          %s531 = sshll.u32 %s528, 4
          %s532 = int_to_ptr.hbm [resolvable:$true] %s531
          %537 = dma.vmem_to_hbm [thread:$0]  %s530, 256, %s532, %s512, 128, 128, 8
        $region56: #{tpu_custom_call.1} parent=47 // pred_fallthru
          _
        // Predicated region
        $region57: #{tpu_custom_call.1} parent=47 // pred_check
          %p538 = pneg %p223
        $region58: #{tpu_custom_call.1} parent=47 // pred_check_branch
          %540 = sbr.rel (%p538) target = $region60
        $region59: #{tpu_custom_call.1} parent=47 // pred_region
          %s541 = smul.u32 2, %s27
          %543 = vsyncadd %s517, 0
          %s544 = smul.addr %s541, 8
          %s545 = scalar_lea.hbm %s8, %s544
          %s546 = sshll.u32 %s520, 4
          %s547 = int_to_ptr.vmem [resolvable:$true] %s546
          %s548 = sshll.u32 %s545, 4
          %s549 = int_to_ptr.hbm [resolvable:$true] %s548
          %554 = dma.vmem_to_hbm [thread:$0]  %s547, 256, %s549, %s517, 128, 128, 8
        $region60: #{tpu_custom_call.1} parent=47 // pred_fallthru
          _
      $region48: #{tpu_custom_call.1} parent=5 // pred_fallthru
        _
      %p555 = scmp.le.s32.totalorder 2, %s22
      // Predicated region
      $region61: #{tpu_custom_call.1} parent=5 // pred_check
        %p556 = pneg %p555
      $region62: #{tpu_custom_call.1} parent=5 // pred_check_branch
        %558 = sbr.rel (%p556) target = $region64
      $region63: #{tpu_custom_call.1} parent=5 // pred_region
        %s559 = ssub.s32 %s22, 2
        // Predicated region
        $region65: #{tpu_custom_call.1} parent=63 // pred_check
          %p560 = pneg %p203
        $region66: #{tpu_custom_call.1} parent=63 // pred_check_branch
          %562 = sbr.rel (%p560) target = $region68
        $region67: #{tpu_custom_call.1} parent=63 // pred_region
          %s563 = sand.u32 %s188, 1
          %s564 = scalar_lea.sflag [#allocation4], %s563
          %s565 = sand.u32 %s188, 1
          %s566 = smul.addr %s565, 16
          %s567 = scalar_lea.vmem [#allocation5], %s566
          %569 = dma.done %s564, 256
        $region68: #{tpu_custom_call.1} parent=63 // pred_fallthru
          _
        // Predicated region
        $region69: #{tpu_custom_call.1} parent=63 // pred_check
          %p570 = pneg %p229
        $region70: #{tpu_custom_call.1} parent=63 // pred_check_branch
          %572 = sbr.rel (%p570) target = $region72
        $region71: #{tpu_custom_call.1} parent=63 // pred_region
          %s573 = sand.u32 %s214, 1
          %s574 = scalar_lea.sflag [#allocation7], %s573
          %s575 = sand.u32 %s214, 1
          %s576 = smul.addr %s575, 16
          %s577 = scalar_lea.vmem [#allocation6], %s576
          %579 = dma.done %s574, 256
        $region72: #{tpu_custom_call.1} parent=63 // pred_fallthru
          _
      $region64: #{tpu_custom_call.1} parent=5 // pred_fallthru
        _
    $region6: #{tpu_custom_call.1} parent=1 // loop_footer
      %s26 = sadd.s32 1, %s22
    $region7: #{tpu_custom_call.1} parent=1 // loop_footer_branch
      %21 = sbr.rel target = $region3
    $region8: #{tpu_custom_call.1} parent=1 // loop_exit
      _
    %580 = vsyncpa [#allocation3], 1
    %s581 = scalar_lea.sflag [#allocation3], 1
    %582 = vsyncpa %s581, 1
    %583 = vsyncpa [#allocation4], 1
    %s584 = scalar_lea.sflag [#allocation4], 1
    %585 = vsyncpa %s584, 1
    %586 = vsyncpa [#allocation7], 1
    %s587 = scalar_lea.sflag [#allocation7], 1
    %588 = vsyncpa %s587, 1

// kernel: tpu_custom_call.1
$region0: #{tpu_custom_call.1}
  #allocation0 [shape = 'u32[]', space=smem, size = 0x4, offset = 0x4, fixed_abs, tag = 'smem constant byte address 0x4 - core index']
  #allocation1 [shape = 'u32[72,128]{1,0:T(1,128)}', space=vmem, size = 0x9000, scoped, tag = 'internal scratch']
  %s0 = inlined_call_operand.vmem [shape: f32[32,16], index: 0, kind: input, shape index: {}]
  %s1 = inlined_call_operand.hbm [shape: bf16[16,32], index: 1, kind: input, shape index: {}]
  %s2 = inlined_call_operand.vmem [shape: f32[1,32], index: 2, kind: input, shape index: {}]
  %s3 = inlined_call_operand.vmem [shape: bf16[32,32], index: 3, kind: input, shape index: {}]
  %s4 = inlined_call_operand.vmem [shape: f32[1,32], index: 4, kind: input, shape index: {}]
  %s5 = inlined_call_operand.vmem [shape: bf16[32,256], index: 5, kind: input, shape index: {}]
  %s6 = inlined_call_operand.vmem [shape: f32[1,256], index: 6, kind: input, shape index: {}]
  %s7 = inlined_call_operand.hbm [shape: f32[32,128], index: 7, kind: output, shape index: {0}]
  %s8 = inlined_call_operand.hbm [shape: f32[32,128], index: 8, kind: output, shape index: {1}]
  %9 = xla_tuple %s7, %s8
  %s10 = sld [smem:[#allocation0]]
  $region73: #{tpu_custom_call.1} parent=0
    _
  %s12 = ssub.s32 1, %s10
  %s13 = scalar_select 0, %s12, %s10
  $region1: #{tpu_custom_call.1} parent=0
    #allocation2 [shape = 'u8[4096]{0}', space=vmem, size = 0x1000, scoped, tag = 'input window, operand 1, single buffered']
    #allocation3 [shape = 's32[2]{0}', space=sflag, size = 0x8, scoped, tag = 'scoped memory for tpu_custom_call.1']
    #allocation4 [shape = 's32[2]{0}', space=sflag, size = 0x8, scoped, tag = 'scoped memory for tpu_custom_call.1']
    #allocation5 [shape = 'u8[16384]{0}', space=vmem, size = 0x4000, scoped, tag = 'output window, operand 0']
    #allocation6 [shape = 'u8[16384]{0}', space=vmem, size = 0x4000, scoped, tag = 'output window, operand 1']
    #allocation7 [shape = 's32[2]{0}', space=sflag, size = 0x8, scoped, tag = 'scoped memory for tpu_custom_call.1']
    %14 = vsyncpa [#allocation3], 0
    %15 = vsyncpa [#allocation4], 0
    %s16 = scalar_lea.sflag [#allocation4], 1
    %17 = vsyncpa %s16, 0
    %18 = vsyncpa [#allocation7], 0
    %s19 = scalar_lea.sflag [#allocation7], 1
    %20 = vsyncpa %s19, 0
    loop: start=0, step=1, limit=4
    $region2: #{tpu_custom_call.1} parent=1 // loop_pre_header
      _
    $region3: #{tpu_custom_call.1} parent=1 // loop_header
      %s22 = sphi 0, %s26
      %p23 = scmp.ge.s32.totalorder %s22, 4
      %s32 = sphi 0, %s34
      %s35 = sphi 0, %s32
      %s36 = sphi 0, %s35
      %s52 = sphi 0, %s36
      %s56 = sphi 0, %s56
      %s58 = sphi 0, %s56
      %s59 = sphi 0, %s58
      %s73 = sphi 0, %s59
      %s77 = sphi 0, %s77
      %s79 = sphi 0, %s77
      %s80 = sphi 0, %s79
      %s94 = sphi 0, %s80
      %s98 = sphi 0, %s98
      %s100 = sphi 0, %s98
      %s101 = sphi 0, %s100
      %s115 = sphi 0, %s101
      %s119 = sphi 0, %s119
      %s121 = sphi 0, %s119
      %s122 = sphi 0, %s121
      %s136 = sphi 0, %s122
      %s140 = sphi 0, %s140
      %s142 = sphi 0, %s140
      %s143 = sphi 0, %s142
      %s157 = sphi 0, %s143
      %s161 = sphi 0, %s161
      %s163 = sphi 0, %s161
      %s164 = sphi 0, %s163
      %s178 = sphi 0, %s164
      %s184 = sphi 0, %s186
      %s187 = sphi 0, %s184
      %s188 = sphi 0, %s187
      %s204 = sphi 0, %s188
      %s210 = sphi 0, %s212
      %s213 = sphi 0, %s210
      %s214 = sphi 0, %s213
      %s230 = sphi 0, %s214
    $region4: #{tpu_custom_call.1} parent=1 // loop_header_branch
      %25 = sbr.rel (%p23) target = $region8
    $region5: #{tpu_custom_call.1} parent=1 // loop_body
      %s27 = ssub.s32 %s22, 1
      %s28 = ssub.s32 %s22, 2
      %s29 = sadd.s32 %s22, 1
      %s30 = ssub.s32 %s22, %s29
      %p31 = scmp.eq.s32.totalorder %s30, 0
      %s33 = sadd.s32 %s32, 1
      %s34 = scalar_select %p31, %s32, %s33
      %p37 = pneg %p31
      %p38 = scmp.eq.s32.totalorder %s22, 1
      %p39 = por %p37, %p38
      %p40 = scmp.ne.s32.totalorder %s32, %s35
      %p41 = scmp.eq.s32.totalorder %s22, 0
      %p42 = por %p40, %p41
      %p43 = scmp.ne.s32.totalorder %s32, %s35
      %p44 = scmp.eq.s32.totalorder %s27, 1
      %p45 = por %p43, %p44
      %p46 = scmp.ne.s32.totalorder %s35, %s36
      %p47 = scmp.eq.s32.totalorder %s27, 0
      %p48 = por %p46, %p47
      %p49 = scmp.ne.s32.totalorder %s35, %s36
      %p50 = scmp.eq.s32.totalorder %s28, 1
      %p51 = por %p49, %p50
      %p53 = scmp.ne.s32.totalorder %s36, %s52
      %p54 = scmp.eq.s32.totalorder %s28, 0
      %p55 = por %p53, %p54
      %s57 = sadd.s32 %s56, 1
      %p60 = scmp.eq.s32.totalorder %s22, 1
      %p61 = scmp.ne.s32.totalorder %s56, %s58
      %p62 = scmp.eq.s32.totalorder %s22, 0
      %p63 = por %p61, %p62
      %p64 = scmp.ne.s32.totalorder %s56, %s58
      %p65 = scmp.eq.s32.totalorder %s27, 1
      %p66 = por %p64, %p65
      %p67 = scmp.ne.s32.totalorder %s58, %s59
      %p68 = scmp.eq.s32.totalorder %s27, 0
      %p69 = por %p67, %p68
      %p70 = scmp.ne.s32.totalorder %s58, %s59
      %p71 = scmp.eq.s32.totalorder %s28, 1
      %p72 = por %p70, %p71
      %p74 = scmp.ne.s32.totalorder %s59, %s73
      %p75 = scmp.eq.s32.totalorder %s28, 0
      %p76 = por %p74, %p75
      %s78 = sadd.s32 %s77, 1
      %p81 = scmp.eq.s32.totalorder %s22, 1
      %p82 = scmp.ne.s32.totalorder %s77, %s79
      %p83 = scmp.eq.s32.totalorder %s22, 0
      %p84 = por %p82, %p83
      %p85 = scmp.ne.s32.totalorder %s77, %s79
      %p86 = scmp.eq.s32.totalorder %s27, 1
      %p87 = por %p85, %p86
      %p88 = scmp.ne.s32.totalorder %s79, %s80
      %p89 = scmp.eq.s32.totalorder %s27, 0
      %p90 = por %p88, %p89
      %p91 = scmp.ne.s32.totalorder %s79, %s80
      %p92 = scmp.eq.s32.totalorder %s28, 1
      %p93 = por %p91, %p92
      %p95 = scmp.ne.s32.totalorder %s80, %s94
      %p96 = scmp.eq.s32.totalorder %s28, 0
      %p97 = por %p95, %p96
      %s99 = sadd.s32 %s98, 1
      %p102 = scmp.eq.s32.totalorder %s22, 1
      %p103 = scmp.ne.s32.totalorder %s98, %s100
      %p104 = scmp.eq.s32.totalorder %s22, 0
      %p105 = por %p103, %p104
      %p106 = scmp.ne.s32.totalorder %s98, %s100
      %p107 = scmp.eq.s32.totalorder %s27, 1
      %p108 = por %p106, %p107
      %p109 = scmp.ne.s32.totalorder %s100, %s101
      %p110 = scmp.eq.s32.totalorder %s27, 0
      %p111 = por %p109, %p110
      %p112 = scmp.ne.s32.totalorder %s100, %s101
      %p113 = scmp.eq.s32.totalorder %s28, 1
      %p114 = por %p112, %p113
      %p116 = scmp.ne.s32.totalorder %s101, %s115
      %p117 = scmp.eq.s32.totalorder %s28, 0
      %p118 = por %p116, %p117
      %s120 = sadd.s32 %s119, 1
      %p123 = scmp.eq.s32.totalorder %s22, 1
      %p124 = scmp.ne.s32.totalorder %s119, %s121
      %p125 = scmp.eq.s32.totalorder %s22, 0
      %p126 = por %p124, %p125
      %p127 = scmp.ne.s32.totalorder %s119, %s121
      %p128 = scmp.eq.s32.totalorder %s27, 1
      %p129 = por %p127, %p128
      %p130 = scmp.ne.s32.totalorder %s121, %s122
      %p131 = scmp.eq.s32.totalorder %s27, 0
      %p132 = por %p130, %p131
      %p133 = scmp.ne.s32.totalorder %s121, %s122
      %p134 = scmp.eq.s32.totalorder %s28, 1
      %p135 = por %p133, %p134
      %p137 = scmp.ne.s32.totalorder %s122, %s136
      %p138 = scmp.eq.s32.totalorder %s28, 0
      %p139 = por %p137, %p138
      %s141 = sadd.s32 %s140, 1
      %p144 = scmp.eq.s32.totalorder %s22, 1
      %p145 = scmp.ne.s32.totalorder %s140, %s142
      %p146 = scmp.eq.s32.totalorder %s22, 0
      %p147 = por %p145, %p146
      %p148 = scmp.ne.s32.totalorder %s140, %s142
      %p149 = scmp.eq.s32.totalorder %s27, 1
      %p150 = por %p148, %p149
      %p151 = scmp.ne.s32.totalorder %s142, %s143
      %p152 = scmp.eq.s32.totalorder %s27, 0
      %p153 = por %p151, %p152
      %p154 = scmp.ne.s32.totalorder %s142, %s143
      %p155 = scmp.eq.s32.totalorder %s28, 1
      %p156 = por %p154, %p155
      %p158 = scmp.ne.s32.totalorder %s143, %s157
      %p159 = scmp.eq.s32.totalorder %s28, 0
      %p160 = por %p158, %p159
      %s162 = sadd.s32 %s161, 1
      %p165 = scmp.eq.s32.totalorder %s22, 1
      %p166 = scmp.ne.s32.totalorder %s161, %s163
      %p167 = scmp.eq.s32.totalorder %s22, 0
      %p168 = por %p166, %p167
      %p169 = scmp.ne.s32.totalorder %s161, %s163
      %p170 = scmp.eq.s32.totalorder %s27, 1
      %p171 = por %p169, %p170
      %p172 = scmp.ne.s32.totalorder %s163, %s164
      %p173 = scmp.eq.s32.totalorder %s27, 0
      %p174 = por %p172, %p173
      %p175 = scmp.ne.s32.totalorder %s163, %s164
      %p176 = scmp.eq.s32.totalorder %s28, 1
      %p177 = por %p175, %p176
      %p179 = scmp.ne.s32.totalorder %s164, %s178
      %p180 = scmp.eq.s32.totalorder %s28, 0
      %p181 = por %p179, %p180
      %s182 = ssub.s32 %s22, %s29
      %p183 = scmp.eq.s32.totalorder %s182, 0
      %s185 = sadd.s32 %s184, 1
      %s186 = scalar_select %p183, %s184, %s185
      %p189 = pneg %p183
      %p190 = scmp.eq.s32.totalorder %s22, 1
      %p191 = por %p189, %p190
      %p192 = scmp.ne.s32.totalorder %s184, %s187
      %p193 = scmp.eq.s32.totalorder %s22, 0
      %p194 = por %p192, %p193
      %p195 = scmp.ne.s32.totalorder %s184, %s187
      %p196 = scmp.eq.s32.totalorder %s27, 1
      %p197 = por %p195, %p196
      %p198 = scmp.ne.s32.totalorder %s187, %s188
      %p199 = scmp.eq.s32.totalorder %s27, 0
      %p200 = por %p198, %p199
      %p201 = scmp.ne.s32.totalorder %s187, %s188
      %p202 = scmp.eq.s32.totalorder %s28, 1
      %p203 = por %p201, %p202
      %p205 = scmp.ne.s32.totalorder %s188, %s204
      %p206 = scmp.eq.s32.totalorder %s28, 0
      %p207 = por %p205, %p206
      %s208 = ssub.s32 %s22, %s29
      %p209 = scmp.eq.s32.totalorder %s208, 0
      %s211 = sadd.s32 %s210, 1
      %s212 = scalar_select %p209, %s210, %s211
      %p215 = pneg %p209
      %p216 = scmp.eq.s32.totalorder %s22, 1
      %p217 = por %p215, %p216
      %p218 = scmp.ne.s32.totalorder %s210, %s213
      %p219 = scmp.eq.s32.totalorder %s22, 0
      %p220 = por %p218, %p219
      %p221 = scmp.ne.s32.totalorder %s210, %s213
      %p222 = scmp.eq.s32.totalorder %s27, 1
      %p223 = por %p221, %p222
      %p224 = scmp.ne.s32.totalorder %s213, %s214
      %p225 = scmp.eq.s32.totalorder %s27, 0
      %p226 = por %p224, %p225
      %p227 = scmp.ne.s32.totalorder %s213, %s214
      %p228 = scmp.eq.s32.totalorder %s28, 1
      %p229 = por %p227, %p228
      %p231 = scmp.ne.s32.totalorder %s214, %s230
      %p232 = scmp.eq.s32.totalorder %s28, 0
      %p233 = por %p231, %p232
      %p234 = scmp.le.s32.totalorder 1, %s22
      %p235 = scmp.lt.s32.totalorder %s22, 3
      %p236 = pnand %p234, %p235
      %p237 = pneg %p236
      // Predicated region
      $region9: #{tpu_custom_call.1} parent=5 // pred_check
        _
      $region10: #{tpu_custom_call.1} parent=5 // pred_check_branch
        %239 = sbr.rel (%p236) target = $region12
      $region11: #{tpu_custom_call.1} parent=5 // pred_region
        %s240 = ssub.s32 %s22, 1
        // Predicated region
        $region13: #{tpu_custom_call.1} parent=11 // pred_check
          %p241 = pneg %p69
        $region14: #{tpu_custom_call.1} parent=11 // pred_check_branch
          %243 = sbr.rel (%p241) target = $region16
        $region15: #{tpu_custom_call.1} parent=11 // pred_region
          %245 = vsyncadd [#allocation3], 0
          %s246 = sshll.u32 %s1, 4
          %s247 = int_to_ptr.hbm [resolvable:$true] %s246
          %s248 = sshll.u32 [#allocation2], 4
          %s249 = int_to_ptr.vmem [resolvable:$true] %s248
          %254 = dma.hbm_to_vmem [thread:$0]  %s247, 128, %s249, [#allocation3], 64, 64, 4
        $region16: #{tpu_custom_call.1} parent=11 // pred_fallthru
          _
        // Predicated region
        $region17: #{tpu_custom_call.1} parent=11 // pred_check
          %p255 = pneg %p90
        $region18: #{tpu_custom_call.1} parent=11 // pred_check_branch
          %257 = sbr.rel (%p255) target = $region20
        $region19: #{tpu_custom_call.1} parent=11 // pred_region
          _
        $region20: #{tpu_custom_call.1} parent=11 // pred_fallthru
          _
        // Predicated region
        $region21: #{tpu_custom_call.1} parent=11 // pred_check
          %p258 = pneg %p111
        $region22: #{tpu_custom_call.1} parent=11 // pred_check_branch
          %260 = sbr.rel (%p258) target = $region24
        $region23: #{tpu_custom_call.1} parent=11 // pred_region
          _
        $region24: #{tpu_custom_call.1} parent=11 // pred_fallthru
          _
        // Predicated region
        $region25: #{tpu_custom_call.1} parent=11 // pred_check
          %p261 = pneg %p132
        $region26: #{tpu_custom_call.1} parent=11 // pred_check_branch
          %263 = sbr.rel (%p261) target = $region28
        $region27: #{tpu_custom_call.1} parent=11 // pred_region
          _
        $region28: #{tpu_custom_call.1} parent=11 // pred_fallthru
          _
        // Predicated region
        $region29: #{tpu_custom_call.1} parent=11 // pred_check
          %p264 = pneg %p153
        $region30: #{tpu_custom_call.1} parent=11 // pred_check_branch
          %266 = sbr.rel (%p264) target = $region32
        $region31: #{tpu_custom_call.1} parent=11 // pred_region
          _
        $region32: #{tpu_custom_call.1} parent=11 // pred_fallthru
          _
        // Predicated region
        $region33: #{tpu_custom_call.1} parent=11 // pred_check
          %p267 = pneg %p174
        $region34: #{tpu_custom_call.1} parent=11 // pred_check_branch
          %269 = sbr.rel (%p267) target = $region36
        $region35: #{tpu_custom_call.1} parent=11 // pred_region
          _
        $region36: #{tpu_custom_call.1} parent=11 // pred_fallthru
          _
      $region12: #{tpu_custom_call.1} parent=5 // pred_fallthru
        _
      %p270 = scmp.lt.s32.totalorder %s22, 2
      // Predicated region
      $region37: #{tpu_custom_call.1} parent=5 // pred_check
        %p271 = pneg %p270
      $region38: #{tpu_custom_call.1} parent=5 // pred_check_branch
        %273 = sbr.rel (%p271) target = $region40
      $region39: #{tpu_custom_call.1} parent=5 // pred_region
        // Predicated region
        $region41: #{tpu_custom_call.1} parent=39 // pred_check
          %p274 = pneg %p42
        $region42: #{tpu_custom_call.1} parent=39 // pred_check_branch
          %276 = sbr.rel (%p274) target = $region44
        $region43: #{tpu_custom_call.1} parent=39 // pred_region
          %s277 = smul.u32 2, %s22
          %p278 = scmp.lt.s32.totalorder %s277, 3
          %s279 = scalar_select %p278, %s277, 3
          %s280 = smul.addr %s279, 8
          %s281 = scalar_lea.vmem %s0, %s280
          %s282 = smul.u32 2, %s22
        $region44: #{tpu_custom_call.1} parent=39 // pred_fallthru
          _
      $region40: #{tpu_custom_call.1} parent=5 // pred_fallthru
        _
      %p283 = scmp.le.s32.totalorder 1, %s22
      %p284 = scmp.lt.s32.totalorder %s22, 3
      %p285 = pnand %p283, %p284
      %p286 = pneg %p285
      // Predicated region
      $region45: #{tpu_custom_call.1} parent=5 // pred_check
        _
      $region46: #{tpu_custom_call.1} parent=5 // pred_check_branch
        %288 = sbr.rel (%p285) target = $region48
      $region47: #{tpu_custom_call.1} parent=5 // pred_region
        %s289 = ssub.s32 %s22, 1
        // Predicated region
        $region49: #{tpu_custom_call.1} parent=47 // pred_check
          %p290 = pneg %p69
        $region50: #{tpu_custom_call.1} parent=47 // pred_check_branch
          %292 = sbr.rel (%p290) target = $region52
        $region51: #{tpu_custom_call.1} parent=47 // pred_region
          %294 = dma.done [#allocation3], 128
        $region52: #{tpu_custom_call.1} parent=47 // pred_fallthru
          _
        %s295 = smul.u32 2, %s27
        %p296 = scmp.lt.s32.totalorder %s295, 3
        %s297 = scalar_select %p296, %s295, 3
        %s298 = smul.addr %s297, 8
        %s299 = scalar_lea.vmem %s0, %s298
        %p300 = pneg %p48
        %p301 = pneg %p45
        %p302 = pneg %p69
        %p303 = pneg %p66
        %p304 = pneg %p90
        %p305 = pneg %p87
        %p306 = pneg %p111
        %p307 = pneg %p108
        %p308 = pneg %p132
        %p309 = pneg %p129
        %p310 = pneg %p153
        %p311 = pneg %p150
        %p312 = pneg %p174
        %p313 = pneg %p171
        %p314 = pneg %p200
        %p315 = pneg %p197
        %s316 = sand.u32 %s187, 1
        %s317 = scalar_lea.sflag [#allocation4], %s316
        %s318 = sand.u32 %s187, 1
        %s319 = smul.addr %s318, 16
        %s320 = scalar_lea.vmem [#allocation5], %s319
        %p321 = pneg %p226
        %p322 = pneg %p223
        %s323 = sand.u32 %s213, 1
        %s324 = scalar_lea.sflag [#allocation7], %s323
        %s325 = sand.u32 %s213, 1
        %s326 = smul.addr %s325, 16
        %s327 = scalar_lea.vmem [#allocation6], %s326
        %s328 = smul.u32 2, %s27
        %p329 = scmp.lt.s32.totalorder %s328, 3
        %s330 = scalar_select %p329, %s328, 3
        %s331 = smul.addr %s330, 8
        %s332 = scalar_lea.vmem %s0, %s331
        %s333 = smul.u32 2, %s27
        %s334 = smul.u32 2, %s27
        %s335 = smul.u32 2, %s27
        %v337 = vld [vmem:[%s332] sm:$0xff]
        %v338 = vld [vmem:[%s332 + $0x8] sm:$0xff]
        %v339 = vpack.c.bf16 %v338, %v337
        %v340 = vld [vmem:[#allocation2] sm:$0xf]
        %v341 = vld [vmem:[#allocation2 + $0x4] sm:$0xf]
        %v342 = vld [vmem:[%s2] sm:$0x1]
        %v344 = vperm.slane %v342, 0
        %v348 = vunpack.c.l.b16 %v340
        %v349 = vunpack.c.l.b16 %v341
        %v350 = vpack.c.b16 %v349, %v348
        %vm352 = vcmask 130048
        %v354 = vsel %vm352, %v339, 0
        %356 = vmatpush.bf16.msra.mxu0 0
        %357 = vmatpush.bf16.msra.mxu0 0
        %358 = vmatpush.bf16.msra.mxu0 0
        %359 = vmatpush.bf16.msra.mxu0 0
        %360 = vmatpush.bf16.msra.mxu0 0
        %361 = vmatpush.bf16.msra.mxu0 0
        %362 = vmatpush.bf16.msra.mxu0 0
        %363 = vmatpush.bf16.msra.mxu0 %v350
        %364 = vmatmul.bf16.gmra.mxu0 %v354
        %v365 = vpop.f32.mrf.mxu0
        %v366 = vadd.f32 %v344, %v365
        %v367 = vpop.f32.mrf.mxu0
        %v368 = vadd.f32 %v344, %v367
        %369 = vdwg.mxu0
        %v370 = vmax.f32 %v366, 0.0
        %v371 = vmax.f32 %v368, 0.0
        %v372 = vpack.c.bf16 %v371, %v370
        %v373 = vld [vmem:[%s3] sm:$0xf]
        %v374 = vld [vmem:[%s3 + $0x4] sm:$0xf]
        %v375 = vld [vmem:[%s3 + $0x8] sm:$0xf]
        %v376 = vld [vmem:[%s3 + $0xc] sm:$0xf]
        %v377 = vld [vmem:[%s4] sm:$0x1]
        %v379 = vperm.slane %v377, 0
        %v385 = vunpack.c.l.b16 %v373
        %v386 = vunpack.c.l.b16 %v374
        %v387 = vunpack.c.l.b16 %v375
        %v388 = vunpack.c.l.b16 %v376
        %v389 = vpack.c.b16 %v386, %v385
        %v390 = vpack.c.b16 %v388, %v387
        %vm393 = vcmask 261120
        %v395 = vsel %vm393, %v372, 0
        %397 = vmatpush.bf16.msra.mxu0 0
        %398 = vmatpush.bf16.msra.mxu0 0
        %399 = vmatpush.bf16.msra.mxu0 0
        %400 = vmatpush.bf16.msra.mxu0 0
        %401 = vmatpush.bf16.msra.mxu0 0
        %402 = vmatpush.bf16.msra.mxu0 0
        %403 = vmatpush.bf16.msra.mxu0 %v390
        %404 = vmatpush.bf16.msra.mxu0 %v389
        %405 = vmatmul.bf16.gmra.mxu0 %v395
        %v406 = vpop.f32.mrf.mxu0
        %v407 = vadd.f32 %v379, %v406
        %v408 = vpop.f32.mrf.mxu0
        %v409 = vadd.f32 %v379, %v408
        %410 = vdwg.mxu0
        %v411 = vmax.f32 %v407, 0.0
        %v412 = vmax.f32 %v409, 0.0
        %v413 = vpack.c.bf16 %v412, %v411
        %v414 = vld [vmem:[%s5] sm:$0xff]
        %v415 = vld [vmem:[%s5 + $0x8] sm:$0xff]
        %v416 = vld [vmem:[%s5 + $0x10] sm:$0xff]
        %v417 = vld [vmem:[%s5 + $0x18] sm:$0xff]
        %v418 = vld [vmem:[%s6] sm:$0x3]
        %v420 = vperm.slane %v418, 0
        %v421 = vperm.slane %v418, 1
        %v428 = vunpack.c.l.b16 %v414
        %v429 = vunpack.c.h.b16 %v414
        %v430 = vunpack.c.l.b16 %v415
        %v431 = vunpack.c.h.b16 %v415
        %v432 = vunpack.c.l.b16 %v416
        %v433 = vunpack.c.h.b16 %v416
        %v434 = vunpack.c.l.b16 %v417
        %v435 = vunpack.c.h.b16 %v417
        %v436 = vpack.c.b16 %v430, %v428
        %v437 = vpack.c.b16 %v431, %v429
        %v438 = vpack.c.b16 %v434, %v432
        %v439 = vpack.c.b16 %v435, %v433
        %v445 = vsel %vm393, %v413, 0
        %447 = vmatpush.bf16.msra.mxu0 0
        %448 = vmatpush.bf16.msra.mxu0 0
        %449 = vmatpush.bf16.msra.mxu0 0
        %450 = vmatpush.bf16.msra.mxu0 0
        %451 = vmatpush.bf16.msra.mxu0 0
        %452 = vmatpush.bf16.msra.mxu0 0
        %453 = vmatpush.bf16.msra.mxu0 %v438
        %454 = vmatpush.bf16.msra.mxu0 %v436
        %455 = vmatmul.bf16.gmra.mxu0 %v445
        %v456 = vpop.f32.mrf.mxu0
        %v457 = vadd.f32 %v420, %v456
        %v458 = vpop.f32.mrf.mxu0
        %v459 = vadd.f32 %v420, %v458
        %460 = vdwg.mxu0
        %461 = vmatpush.bf16.msra.mxu0 0
        %462 = vmatpush.bf16.msra.mxu0 0
        %463 = vmatpush.bf16.msra.mxu0 0
        %464 = vmatpush.bf16.msra.mxu0 0
        %465 = vmatpush.bf16.msra.mxu0 0
        %466 = vmatpush.bf16.msra.mxu0 0
        %467 = vmatpush.bf16.msra.mxu0 %v439
        %468 = vmatpush.bf16.msra.mxu0 %v437
        %469 = vmatmul.bf16.gmra.mxu0 %v445
        %v470 = vpop.f32.mrf.mxu0
        %v471 = vadd.f32 %v421, %v470
        %v472 = vpop.f32.mrf.mxu0
        %v473 = vadd.f32 %v421, %v472
        %474 = vdwg.mxu0
        %475 = vst [vmem:[%s320] sm:$0xff] %v457
        %476 = vst [vmem:[%s320 + $0x8] sm:$0xff] %v459
        %v477 = vmax.f32 %v471, 0.0
        %v478 = vmax.f32 %v473, 0.0
        %v479 = vand.u32 2147483647, %v471
        %v480 = vand.u32 2147483647, %v473
        %v481 = vsub.f32 0.0, %v479
        %v482 = vsub.f32 0.0, %v480
        %v483 = vmul.f32 %v481, 1.442695
        %v484 = vpow.pop %v483
        %v485 = vmul.f32 %v482, 1.442695
        %v486 = vpow.pop %v485
        %v487 = vadd.f32 %v484, 1.0
        %v488 = vlog2.pop %v487
        %v489 = vmul.f32 %v488, 0.6931472
        %v490 = vmul.f32 -0.5, %v484
        %v491 = vadd.f32 %v490, 1.0
        %v492 = vmul.f32 %v491, %v484
        %v493 = vand.u32 2147483647, %v484
        %vm494 = vcmp.lt.f32.partialorder %v493, 0.0004427343
        %v495 = vsel %vm494, %v492, %v489
        %v496 = vadd.f32 %v486, 1.0
        %v497 = vlog2.pop %v496
        %v498 = vmul.f32 %v497, 0.6931472
        %v499 = vmul.f32 -0.5, %v486
        %v500 = vadd.f32 %v499, 1.0
        %v501 = vmul.f32 %v500, %v486
        %v502 = vand.u32 2147483647, %v486
        %vm503 = vcmp.lt.f32.partialorder %v502, 0.0004427343
        %v504 = vsel %vm503, %v501, %v498
        %v505 = vadd.f32 %v477, %v495
        %v506 = vadd.f32 %v478, %v504
        %v507 = vadd.f32 %v505, 1e-06
        %v508 = vadd.f32 %v506, 1e-06
        %509 = vst [vmem:[%s327] sm:$0xff] %v507
        %510 = vst [vmem:[%s327 + $0x8] sm:$0xff] %v508
        %s511 = sand.u32 %s187, 1
        %s512 = scalar_lea.sflag [#allocation4], %s511
        %s513 = sand.u32 %s187, 1
        %s514 = smul.addr %s513, 16
        %s515 = scalar_lea.vmem [#allocation5], %s514
        %s516 = sand.u32 %s213, 1
        %s517 = scalar_lea.sflag [#allocation7], %s516
        %s518 = sand.u32 %s213, 1
        %s519 = smul.addr %s518, 16
        %s520 = scalar_lea.vmem [#allocation6], %s519
        // Predicated region
        $region53: #{tpu_custom_call.1} parent=47 // pred_check
          %p521 = pneg %p197
        $region54: #{tpu_custom_call.1} parent=47 // pred_check_branch
          %523 = sbr.rel (%p521) target = $region56
        $region55: #{tpu_custom_call.1} parent=47 // pred_region
          %s524 = smul.u32 2, %s27
          %526 = vsyncadd %s512, 0
          %s527 = smul.addr %s524, 8
          %s528 = scalar_lea.hbm %s7, %s527
          %s529 = sshll.u32 %s515, 4
          %s530 = int_to_ptr.vmem [resolvable:$true] %s529
          %s531 = sshll.u32 %s528, 4
          %s532 = int_to_ptr.hbm [resolvable:$true] %s531
          %537 = dma.vmem_to_hbm [thread:$0]  %s530, 256, %s532, %s512, 128, 128, 8
        $region56: #{tpu_custom_call.1} parent=47 // pred_fallthru
          _
        // Predicated region
        $region57: #{tpu_custom_call.1} parent=47 // pred_check
          %p538 = pneg %p223
        $region58: #{tpu_custom_call.1} parent=47 // pred_check_branch
          %540 = sbr.rel (%p538) target = $region60
        $region59: #{tpu_custom_call.1} parent=47 // pred_region
          %s541 = smul.u32 2, %s27
          %543 = vsyncadd %s517, 0
          %s544 = smul.addr %s541, 8
          %s545 = scalar_lea.hbm %s8, %s544
          %s546 = sshll.u32 %s520, 4
          %s547 = int_to_ptr.vmem [resolvable:$true] %s546
          %s548 = sshll.u32 %s545, 4
          %s549 = int_to_ptr.hbm [resolvable:$true] %s548
          %554 = dma.vmem_to_hbm [thread:$0]  %s547, 256, %s549, %s517, 128, 128, 8
        $region60: #{tpu_custom_call.1} parent=47 // pred_fallthru
          _
      $region48: #{tpu_custom_call.1} parent=5 // pred_fallthru
        _
      %p555 = scmp.le.s32.totalorder 2, %s22
      // Predicated region
      $region61: #{tpu_custom_call.1} parent=5 // pred_check
        %p556 = pneg %p555
      $region62: #{tpu_custom_call.1} parent=5 // pred_check_branch
        %558 = sbr.rel (%p556) target = $region64
      $region63: #{tpu_custom_call.1} parent=5 // pred_region
        %s559 = ssub.s32 %s22, 2
        // Predicated region
        $region65: #{tpu_custom_call.1} parent=63 // pred_check
          %p560 = pneg %p203
        $region66: #{tpu_custom_call.1} parent=63 // pred_check_branch
          %562 = sbr.rel (%p560) target = $region68
        $region67: #{tpu_custom_call.1} parent=63 // pred_region
          %s563 = sand.u32 %s188, 1
          %s564 = scalar_lea.sflag [#allocation4], %s563
          %s565 = sand.u32 %s188, 1
          %s566 = smul.addr %s565, 16
          %s567 = scalar_lea.vmem [#allocation5], %s566
          %569 = dma.done %s564, 256
        $region68: #{tpu_custom_call.1} parent=63 // pred_fallthru
          _
        // Predicated region
        $region69: #{tpu_custom_call.1} parent=63 // pred_check
          %p570 = pneg %p229
        $region70: #{tpu_custom_call.1} parent=63 // pred_check_branch
          %572 = sbr.rel (%p570) target = $region72
        $region71: #{tpu_custom_call.1} parent=63 // pred_region
          %s573 = sand.u32 %s214, 1
          %s574 = scalar_lea.sflag [#allocation7], %s573
          %s575 = sand.u32 %s214, 1
          %s576 = smul.addr %s575, 16
          %s577 = scalar_lea.vmem [#allocation6], %s576
          %579 = dma.done %s574, 256
        $region72: #{tpu_custom_call.1} parent=63 // pred_fallthru
          _
      $region64: #{tpu_custom_call.1} parent=5 // pred_fallthru
        _
    $region6: #{tpu_custom_call.1} parent=1 // loop_footer
      %s26 = sadd.s32 1, %s22
    $region7: #{tpu_custom_call.1} parent=1 // loop_footer_branch
      %21 = sbr.rel target = $region3
    $region8: #{tpu_custom_call.1} parent=1 // loop_exit
      _
    %580 = vsyncpa [#allocation3], 1
    %s581 = scalar_lea.sflag [#allocation3], 1
    %582 = vsyncpa %s581, 1
    %583 = vsyncpa [#allocation4], 1
    %s584 = scalar_lea.sflag [#allocation4], 1
    %585 = vsyncpa %s584, 1
    %586 = vsyncpa [#allocation7], 1
    %s587 = scalar_lea.sflag [#allocation7], 1
    %588 = vsyncpa %s587, 1

</llo_original>
